<compile_context>
chip_gen: v5e
topology: v5e:2x2
jax: 0.10.0
libtpu: 0.0.40
codegen_flags: <defaults>
</compile_context>

<pallas_src>
import functools

import numpy as np
import jax
import jax.numpy as jnp
from jax import lax
from jax.experimental import pallas as pl
from jax.experimental.pallas import tpu as pltpu

F32 = jnp.float32

# ----------------------------- model hyper-params ---------------------------
N_NODE_LABELS = 8
N_EDGE_LABELS = 4
F1, F2, F3 = 32, 24, 16          # GCN filter sizes (node and edge paths)
TENSOR_NEURONS = 16              # args.tensor_neurons
BINS = 16                        # args.bins
BOTTLE = 16                      # args.bottle_neck_neurons
FEATURE_COUNT = 2 * TENSOR_NEURONS + BINS   # tensor_layer_out + bins = 48

_VMEM_SPEC = pl.BlockSpec(memory_space=pltpu.MemorySpace.VMEM)


# ============================ the fused kernel ===============================

def _graphsim_kernel(
    an_ref, xn_ref, ae_ref, xe_ref,
    wn1_ref, bn1_ref, wn2_ref, bn2_ref, wn3_ref, bn3_ref,
    we1_ref, be1_ref, we2_ref, be2_ref, we3_ref, be3_ref,
    attn_w_ref, atte_w_ref,
    w2d_ref, ntn_rep_ref, ntn_sel_ref, wbt_ref, ntn_b_ref,
    fc1wt_ref, fc1b_ref, fc2wt_ref, fc2b_ref,
    hsel1_ref, hsel2_ref, hrep_ref, hbin_ref, hselb_ref,
    o_ref,
    *, n1, n2, m1, m2, bins, f3, tneurons):
  """Entire GraphSim forward in one kernel; all intermediates stay in VMEM."""

  def mm(a, b):
    return jnp.dot(a, b, preferred_element_type=F32)

  # ---- GCN stacks: both graphs batched via block-diagonal adjacency --------
  def gcn3(a, x, w1, b1, w2, b2, w3, b3):
    h = jnp.maximum(mm(mm(a, x), w1) + b1, 0.0)
    h = jnp.maximum(mm(mm(a, h), w2) + b2, 0.0)
    return mm(mm(a, h), w3) + b3

  xn = gcn3(an_ref[...], xn_ref[...],
            wn1_ref[...], bn1_ref[...], wn2_ref[...], bn2_ref[...],
            wn3_ref[...], bn3_ref[...])                         # (n1+n2, F3)
  xe = gcn3(ae_ref[...], xe_ref[...],
            we1_ref[...], be1_ref[...], we2_ref[...], be2_ref[...],
            we3_ref[...], be3_ref[...])                         # (m1+m2, F3)

  # ---- SimGNN attention pooling: both graphs at once via row masks ---------
  def attention_pool2(x, w, rows_a, rows_b):
    rows = x.shape[0]
    mask_a = (lax.broadcasted_iota(jnp.int32, (rows, 1), 0) < rows_a).astype(F32)
    mask_b = 1.0 - mask_a
    t = mm(x, w)                                                # (rows, F3)
    ctx_a = jnp.tanh(jnp.sum(t * mask_a, axis=0, keepdims=True) * (1.0 / rows_a))
    ctx_b = jnp.tanh(jnp.sum(t * mask_b, axis=0, keepdims=True) * (1.0 / rows_b))
    ctx = mask_a * ctx_a + mask_b * ctx_b                       # (rows, F3)
    gate = jax.nn.sigmoid(jnp.sum(x * ctx, axis=1, keepdims=True))  # (rows, 1)
    wx = gate * x
    pooled_a = jnp.sum(wx * mask_a, axis=0, keepdims=True)      # (1, F3)
    pooled_b = jnp.sum(wx * mask_b, axis=0, keepdims=True)      # (1, F3)
    return pooled_a, pooled_b

  p_n1, p_n2 = attention_pool2(xn, attn_w_ref[...], n1, n2)
  p_e1, p_e2 = attention_pool2(xe, atte_w_ref[...], m1, m2)

  # ---- neural tensor network (row-vector form; reshape-free via rep/sel) ---
  w2d = w2d_ref[...]                       # W.view(F, F*T), pre-reshaped
  rep = ntn_rep_ref[...]
  sel = ntn_sel_ref[...]
  wbt_a = wbt_ref[:f3, :]                  # W_block.T rows for e1
  wbt_b = wbt_ref[f3:, :]                  # W_block.T rows for e2
  ntn_b = ntn_b_ref[...]

  def ntn(e1, e2):
    s1 = mm(mm(e1, w2d) * mm(e2, rep), sel)                     # e1^T W[:,:,t] e2
    s2 = mm(e1, wbt_a) + mm(e2, wbt_b)                          # W_block @ [e1;e2]
    return jnp.maximum(s1 + s2 + ntn_b, 0.0)                    # (1, T)

  s_node = ntn(p_n1, p_n2)
  s_edge = ntn(p_e1, p_e2)

  # ---- histogram of af1 @ af2_padded^T (torch.histc semantics) -------------
  af1p = mm(hsel1_ref[...], xn)            # (nmax, F3), zero rows past n1
  af2p = mm(hsel2_ref[...], xn)            # (nmax, F3), zero rows past n2
  s = lax.dot_general(af1p, af2p, (((1,), (1,)), ((), ())),
                      preferred_element_type=F32)               # (nmax, nmax)
  smin = jnp.min(s, keepdims=True)
  smax = jnp.max(s, keepdims=True)
  # eps guard: all-equal scores would otherwise give 0*inf -> NaN.
  scale = bins / jnp.maximum(smax - smin, 1e-12)
  bidx = jnp.clip(jnp.floor((s - smin) * scale), 0.0, float(bins - 1))
  # Loop-free counting: replicate each bin index across `bins` lanes (MXU),
  # one vector compare against the per-lane bin id, fold to (nmax, bins)
  # (MXU), then a single row reduction.
  match = (mm(bidx, hrep_ref[...]) == hbin_ref[...]).astype(F32)
  hist = jnp.sum(mm(match, hselb_ref[...]), axis=0, keepdims=True)  # (1, bins)
  hist = hist / jnp.sum(hist, keepdims=True)

  # ---- MLP head: sigmoid(relu([s_node, s_edge, hist] @ W1^T + b1) @ W2^T + b2)
  # The concat is avoided by splitting W1^T into its three row blocks.
  t = tneurons
  h = (mm(s_node, fc1wt_ref[:t, :]) +
       mm(s_edge, fc1wt_ref[t:2 * t, :]) +
       mm(hist, fc1wt_ref[2 * t:, :]) + fc1b_ref[...])
  h = jnp.maximum(h, 0.0)
  o_ref[...] = jax.nn.sigmoid(mm(h, fc2wt_ref[...]) + fc2b_ref[...])


# ============================== host-side glue ===============================

def _block_diag_norm_adj(edge_index_1, n1, edge_index_2, n2):
  """Row-normalized (A + I) for the two graphs stacked block-diagonally."""
  n = n1 + n2
  a = np.zeros((n, n), np.float32)
  a[edge_index_1[0], edge_index_1[1]] = 1.0
  a[n1 + edge_index_2[0], n1 + edge_index_2[1]] = 1.0
  a += np.eye(n, dtype=np.float32)
  a /= a.sum(axis=1, keepdims=True)
  return jnp.asarray(a)


def _hist_constants(n1, n2, bins):
  """Selector matrices for the in-kernel, loop-free histogram (trace-time)."""
  nmax = max(n1, n2)
  ntot = n1 + n2
  sel1 = np.zeros((nmax, ntot), np.float32)
  sel1[np.arange(n1), np.arange(n1)] = 1.0
  sel2 = np.zeros((nmax, ntot), np.float32)
  sel2[np.arange(n2), n1 + np.arange(n2)] = 1.0
  rep = np.zeros((nmax, nmax * bins), np.float32)
  bin_ids = np.zeros((1, nmax * bins), np.float32)
  selb = np.zeros((nmax * bins, bins), np.float32)
  for j in range(nmax):
    for b in range(bins):
      rep[j, j * bins + b] = 1.0
      bin_ids[0, j * bins + b] = float(b)
      selb[j * bins + b, b] = 1.0
  return tuple(jnp.asarray(x) for x in (sel1, sel2, rep, bin_ids, selb))


def _ntn_selectors(f, t):
  rep = np.zeros((f, f * t), np.float32)
  sel = np.zeros((f * t, t), np.float32)
  for ff in range(f):
    for tt in range(t):
      rep[ff, ff * t + tt] = 1.0
      sel[ff * t + tt, tt] = 1.0
  return jnp.asarray(rep), jnp.asarray(sel)


def graphsim_forward(params, data):
  nf1, nf2 = data["node_features_1"], data["node_features_2"]
  ef1, ef2 = data["edge_features_1"], data["edge_features_2"]
  n1, n2 = nf1.shape[0], nf2.shape[0]
  m1, m2 = ef1.shape[0], ef2.shape[0]

  a_node = _block_diag_norm_adj(np.asarray(data["edge_index_1"]), n1,
                                np.asarray(data["edge_index_2"]), n2)
  a_edge = _block_diag_norm_adj(np.asarray(data["trans_edge_index_1"]), m1,
                                np.asarray(data["trans_edge_index_2"]), m2)
  x_node = jnp.concatenate([nf1, nf2], axis=0)
  x_edge = jnp.concatenate([ef1, ef2], axis=0)
  hist_consts = _hist_constants(n1, n2, BINS)

  inputs = (a_node, x_node, a_edge, x_edge,
            *params["node_gcn_flat"], *params["edge_gcn_flat"],
            params["att_node_w"], params["att_edge_w"],
            params["ntn_w2d"], params["ntn_rep"], params["ntn_sel"],
            params["ntn_wbt"], params["ntn_b_row"],
            params["fc1_wt"], params["fc1_b_row"],
            params["fc2_wt"], params["fc2_b_row"],
            *hist_consts)

  kernel = functools.partial(_graphsim_kernel, n1=n1, n2=n2, m1=m1, m2=m2,
                             bins=BINS, f3=F3, tneurons=TENSOR_NEURONS)
  return pl.pallas_call(
      kernel,
      out_shape=jax.ShapeDtypeStruct((1, 1), F32),
      in_specs=[_VMEM_SPEC] * len(inputs),
      out_specs=_VMEM_SPEC,
  )(*inputs)


def init_params(key):
  ks = jax.random.split(key, 12)

  def glorot(k, shape):
    std = (2.0 / (shape[0] + shape[-1])) ** 0.5
    return (std * jax.random.normal(k, shape)).astype(F32)

  dims_node = [N_NODE_LABELS, F1, F2, F3]
  dims_edge = [N_EDGE_LABELS, F1, F2, F3]
  p = {}
  node_flat, edge_flat = [], []
  for i in range(3):
    node_flat += [glorot(ks[i], (dims_node[i], dims_node[i + 1])),
                  jnp.zeros((1, dims_node[i + 1]), F32)]
    edge_flat += [glorot(ks[3 + i], (dims_edge[i], dims_edge[i + 1])),
                  jnp.zeros((1, dims_edge[i + 1]), F32)]
  p["node_gcn_flat"] = tuple(node_flat)
  p["edge_gcn_flat"] = tuple(edge_flat)
  p["att_node_w"] = glorot(ks[6], (F3, F3))
  p["att_edge_w"] = glorot(ks[7], (F3, F3))
  # NTN weights, pre-reshaped / pre-transposed once (not per forward).
  ntn_w = glorot(ks[8], (F3, F3, TENSOR_NEURONS))
  p["ntn_w2d"] = ntn_w.reshape(F3, F3 * TENSOR_NEURONS)          # (F, F*T)
  ntn_wb = glorot(ks[9], (TENSOR_NEURONS, 2 * F3))
  p["ntn_wbt"] = ntn_wb.T                                        # (2F, T)
  p["ntn_b_row"] = jnp.zeros((1, TENSOR_NEURONS), F32)           # bias.T
  fc1_w = glorot(ks[10], (BOTTLE, FEATURE_COUNT))
  p["fc1_wt"] = fc1_w.T                                          # (48, 16)
  p["fc1_b_row"] = jnp.zeros((1, BOTTLE), F32)
  fc2_w = glorot(ks[11], (1, BOTTLE))
  p["fc2_wt"] = fc2_w.T                                          # (16, 1)
  p["fc2_b_row"] = jnp.zeros((1, 1), F32)
  p["ntn_rep"], p["ntn_sel"] = _ntn_selectors(F3, TENSOR_NEURONS)
  return p


def build_graph(n, extra_chords):
  """Ring + chords, symmetrized edge_index and its line graph (numpy glue)."""
  und = [(i, (i + 1) % n) for i in range(n)] + list(extra_chords)
  src, dst = [], []
  for (u, v) in und:
    src += [u, v]
    dst += [v, u]
  edge_index = np.array([src, dst], dtype=np.int32)              # (2, m)
  m = edge_index.shape[1]
  ts, td = [], []
  for i in range(m):
    ei = {int(edge_index[0, i]), int(edge_index[1, i])}
    for j in range(m):
      if i == j:
        continue
      ej = {int(edge_index[0, j]), int(edge_index[1, j])}
      if ei & ej:
        ts.append(i)
        td.append(j)
  trans_edge_index = np.array([ts, td], dtype=np.int32)
  return edge_index, trans_edge_index


# ================================== main =====================================

if __name__ == "__main__":
  key = jax.random.PRNGKey(0)
  k_params, k1, k2, k3, k4 = jax.random.split(key, 5)
  params = init_params(k_params)

  ei1, tei1 = build_graph(12, [(0, 6), (2, 8), (4, 10), (1, 5), (3, 9), (7, 11)])
  ei2, tei2 = build_graph(9, [(0, 4), (2, 6), (1, 7)])

  nl1 = jax.random.randint(k1, (12,), 0, N_NODE_LABELS)
  nl2 = jax.random.randint(k2, (9,), 0, N_NODE_LABELS)
  el1 = jax.random.randint(k3, (ei1.shape[1],), 0, N_EDGE_LABELS)
  el2 = jax.random.randint(k4, (ei2.shape[1],), 0, N_EDGE_LABELS)

  data = {
      "node_features_1": jax.nn.one_hot(nl1, N_NODE_LABELS, dtype=F32),
      "node_features_2": jax.nn.one_hot(nl2, N_NODE_LABELS, dtype=F32),
      "edge_features_1": jax.nn.one_hot(el1, N_EDGE_LABELS, dtype=F32),
      "edge_features_2": jax.nn.one_hot(el2, N_EDGE_LABELS, dtype=F32),
      "edge_index_1": ei1,
      "edge_index_2": ei2,
      "trans_edge_index_1": tei1,
      "trans_edge_index_2": tei2,
  }

  score = graphsim_forward(params, data)
  score = jax.block_until_ready(score)
  assert score.shape == (1, 1)
  assert bool(jnp.all(jnp.isfinite(score)))
  print("KERNEL_OK")
</pallas_src>

<mosaic_0001>
module attributes {stable_mosaic.version = 11 : i64} {
  func.func @_graphsim_kernel(%arg0: memref<21x21xf32, #tpu.memory_space<vmem>>, %arg1: memref<21x8xf32, #tpu.memory_space<vmem>>, %arg2: memref<60x60xf32, #tpu.memory_space<vmem>>, %arg3: memref<60x4xf32, #tpu.memory_space<vmem>>, %arg4: memref<8x32xf32, #tpu.memory_space<vmem>>, %arg5: memref<1x32xf32, #tpu.memory_space<vmem>>, %arg6: memref<32x24xf32, #tpu.memory_space<vmem>>, %arg7: memref<1x24xf32, #tpu.memory_space<vmem>>, %arg8: memref<24x16xf32, #tpu.memory_space<vmem>>, %arg9: memref<1x16xf32, #tpu.memory_space<vmem>>, %arg10: memref<4x32xf32, #tpu.memory_space<vmem>>, %arg11: memref<1x32xf32, #tpu.memory_space<vmem>>, %arg12: memref<32x24xf32, #tpu.memory_space<vmem>>, %arg13: memref<1x24xf32, #tpu.memory_space<vmem>>, %arg14: memref<24x16xf32, #tpu.memory_space<vmem>>, %arg15: memref<1x16xf32, #tpu.memory_space<vmem>>, %arg16: memref<16x16xf32, #tpu.memory_space<vmem>>, %arg17: memref<16x16xf32, #tpu.memory_space<vmem>>, %arg18: memref<16x256xf32, #tpu.memory_space<vmem>>, %arg19: memref<16x256xf32, #tpu.memory_space<vmem>>, %arg20: memref<256x16xf32, #tpu.memory_space<vmem>>, %arg21: memref<32x16xf32, #tpu.memory_space<vmem>>, %arg22: memref<1x16xf32, #tpu.memory_space<vmem>>, %arg23: memref<48x16xf32, #tpu.memory_space<vmem>>, %arg24: memref<1x16xf32, #tpu.memory_space<vmem>>, %arg25: memref<16x1xf32, #tpu.memory_space<vmem>>, %arg26: memref<1x1xf32, #tpu.memory_space<vmem>>, %arg27: memref<12x21xf32, #tpu.memory_space<vmem>>, %arg28: memref<12x21xf32, #tpu.memory_space<vmem>>, %arg29: memref<12x192xf32, #tpu.memory_space<vmem>>, %arg30: memref<1x192xf32, #tpu.memory_space<vmem>>, %arg31: memref<192x16xf32, #tpu.memory_space<vmem>>, %arg32: memref<1x1xf32, #tpu.memory_space<vmem>>) attributes {dimension_semantics = [], scalar_prefetch = 0 : i64, scratch_operands = 0 : i64, tpu.core_type = #tpu.core_type<tc>} {
    %c0 = arith.constant 0 : index
    %c0_0 = arith.constant 0 : index
    %0 = vector.load %arg0[%c0, %c0_0] : memref<21x21xf32, #tpu.memory_space<vmem>>, vector<21x21xf32>
    %c0_1 = arith.constant 0 : index
    %c0_2 = arith.constant 0 : index
    %1 = vector.load %arg1[%c0_1, %c0_2] : memref<21x8xf32, #tpu.memory_space<vmem>>, vector<21x8xf32>
    %c0_3 = arith.constant 0 : index
    %c0_4 = arith.constant 0 : index
    %2 = vector.load %arg4[%c0_3, %c0_4] : memref<8x32xf32, #tpu.memory_space<vmem>>, vector<8x32xf32>
    %c0_5 = arith.constant 0 : index
    %c0_6 = arith.constant 0 : index
    %3 = vector.load %arg5[%c0_5, %c0_6] : memref<1x32xf32, #tpu.memory_space<vmem>>, vector<1x32xf32>
    %c0_7 = arith.constant 0 : index
    %c0_8 = arith.constant 0 : index
    %4 = vector.load %arg6[%c0_7, %c0_8] : memref<32x24xf32, #tpu.memory_space<vmem>>, vector<32x24xf32>
    %c0_9 = arith.constant 0 : index
    %c0_10 = arith.constant 0 : index
    %5 = vector.load %arg7[%c0_9, %c0_10] : memref<1x24xf32, #tpu.memory_space<vmem>>, vector<1x24xf32>
    %c0_11 = arith.constant 0 : index
    %c0_12 = arith.constant 0 : index
    %6 = vector.load %arg8[%c0_11, %c0_12] : memref<24x16xf32, #tpu.memory_space<vmem>>, vector<24x16xf32>
    %c0_13 = arith.constant 0 : index
    %c0_14 = arith.constant 0 : index
    %7 = vector.load %arg9[%c0_13, %c0_14] : memref<1x16xf32, #tpu.memory_space<vmem>>, vector<1x16xf32>
    %cst = arith.constant dense<0.000000e+00> : vector<21x8xf32>
    %8 = tpu.matmul %0, %1, %cst {dimension_numbers = #tpu.dot_dimension_numbers<[1], [0], [0], [1], [0, 0, 1, 1], [], []>} : vector<21x21xf32>, vector<21x8xf32>, vector<21x8xf32> -> vector<21x8xf32>
    %cst_15 = arith.constant dense<0.000000e+00> : vector<21x32xf32>
    %9 = tpu.matmul %8, %2, %cst_15 {dimension_numbers = #tpu.dot_dimension_numbers<[1], [0], [0], [1], [0, 0, 1, 1], [], []>} : vector<21x8xf32>, vector<8x32xf32>, vector<21x32xf32> -> vector<21x32xf32>
    %10 = vector.broadcast %3 : vector<1x32xf32> to vector<21x32xf32>
    %11 = arith.addf %9, %10 : vector<21x32xf32>
    %cst_16 = arith.constant 0.000000e+00 : f32
    %12 = vector.broadcast %cst_16 : f32 to vector<21x32xf32>
    %13 = arith.maximumf %11, %12 : vector<21x32xf32>
    %cst_17 = arith.constant dense<0.000000e+00> : vector<21x32xf32>
    %14 = tpu.matmul %0, %13, %cst_17 {dimension_numbers = #tpu.dot_dimension_numbers<[1], [0], [0], [1], [0, 0, 1, 1], [], []>} : vector<21x21xf32>, vector<21x32xf32>, vector<21x32xf32> -> vector<21x32xf32>
    %cst_18 = arith.constant dense<0.000000e+00> : vector<21x24xf32>
    %15 = tpu.matmul %14, %4, %cst_18 {dimension_numbers = #tpu.dot_dimension_numbers<[1], [0], [0], [1], [0, 0, 1, 1], [], []>} : vector<21x32xf32>, vector<32x24xf32>, vector<21x24xf32> -> vector<21x24xf32>
    %16 = vector.broadcast %5 : vector<1x24xf32> to vector<21x24xf32>
    %17 = arith.addf %15, %16 : vector<21x24xf32>
    %cst_19 = arith.constant 0.000000e+00 : f32
    %18 = vector.broadcast %cst_19 : f32 to vector<21x24xf32>
    %19 = arith.maximumf %17, %18 : vector<21x24xf32>
    %cst_20 = arith.constant dense<0.000000e+00> : vector<21x24xf32>
    %20 = tpu.matmul %0, %19, %cst_20 {dimension_numbers = #tpu.dot_dimension_numbers<[1], [0], [0], [1], [0, 0, 1, 1], [], []>} : vector<21x21xf32>, vector<21x24xf32>, vector<21x24xf32> -> vector<21x24xf32>
    %cst_21 = arith.constant dense<0.000000e+00> : vector<21x16xf32>
    %21 = tpu.matmul %20, %6, %cst_21 {dimension_numbers = #tpu.dot_dimension_numbers<[1], [0], [0], [1], [0, 0, 1, 1], [], []>} : vector<21x24xf32>, vector<24x16xf32>, vector<21x16xf32> -> vector<21x16xf32>
    %22 = vector.broadcast %7 : vector<1x16xf32> to vector<21x16xf32>
    %23 = arith.addf %21, %22 : vector<21x16xf32>
    %c0_22 = arith.constant 0 : index
    %c0_23 = arith.constant 0 : index
    %24 = vector.load %arg2[%c0_22, %c0_23] : memref<60x60xf32, #tpu.memory_space<vmem>>, vector<60x60xf32>
    %c0_24 = arith.constant 0 : index
    %c0_25 = arith.constant 0 : index
    %25 = vector.load %arg3[%c0_24, %c0_25] : memref<60x4xf32, #tpu.memory_space<vmem>>, vector<60x4xf32>
    %c0_26 = arith.constant 0 : index
    %c0_27 = arith.constant 0 : index
    %26 = vector.load %arg10[%c0_26, %c0_27] : memref<4x32xf32, #tpu.memory_space<vmem>>, vector<4x32xf32>
    %c0_28 = arith.constant 0 : index
    %c0_29 = arith.constant 0 : index
    %27 = vector.load %arg11[%c0_28, %c0_29] : memref<1x32xf32, #tpu.memory_space<vmem>>, vector<1x32xf32>
    %c0_30 = arith.constant 0 : index
    %c0_31 = arith.constant 0 : index
    %28 = vector.load %arg12[%c0_30, %c0_31] : memref<32x24xf32, #tpu.memory_space<vmem>>, vector<32x24xf32>
    %c0_32 = arith.constant 0 : index
    %c0_33 = arith.constant 0 : index
    %29 = vector.load %arg13[%c0_32, %c0_33] : memref<1x24xf32, #tpu.memory_space<vmem>>, vector<1x24xf32>
    %c0_34 = arith.constant 0 : index
    %c0_35 = arith.constant 0 : index
    %30 = vector.load %arg14[%c0_34, %c0_35] : memref<24x16xf32, #tpu.memory_space<vmem>>, vector<24x16xf32>
    %c0_36 = arith.constant 0 : index
    %c0_37 = arith.constant 0 : index
    %31 = vector.load %arg15[%c0_36, %c0_37] : memref<1x16xf32, #tpu.memory_space<vmem>>, vector<1x16xf32>
    %cst_38 = arith.constant dense<0.000000e+00> : vector<60x4xf32>
    %32 = tpu.matmul %24, %25, %cst_38 {dimension_numbers = #tpu.dot_dimension_numbers<[1], [0], [0], [1], [0, 0, 1, 1], [], []>} : vector<60x60xf32>, vector<60x4xf32>, vector<60x4xf32> -> vector<60x4xf32>
    %cst_39 = arith.constant dense<0.000000e+00> : vector<60x32xf32>
    %33 = tpu.matmul %32, %26, %cst_39 {dimension_numbers = #tpu.dot_dimension_numbers<[1], [0], [0], [1], [0, 0, 1, 1], [], []>} : vector<60x4xf32>, vector<4x32xf32>, vector<60x32xf32> -> vector<60x32xf32>
    %34 = vector.broadcast %27 : vector<1x32xf32> to vector<60x32xf32>
    %35 = arith.addf %33, %34 : vector<60x32xf32>
    %cst_40 = arith.constant 0.000000e+00 : f32
    %36 = vector.broadcast %cst_40 : f32 to vector<60x32xf32>
    %37 = arith.maximumf %35, %36 : vector<60x32xf32>
    %cst_41 = arith.constant dense<0.000000e+00> : vector<60x32xf32>
    %38 = tpu.matmul %24, %37, %cst_41 {dimension_numbers = #tpu.dot_dimension_numbers<[1], [0], [0], [1], [0, 0, 1, 1], [], []>} : vector<60x60xf32>, vector<60x32xf32>, vector<60x32xf32> -> vector<60x32xf32>
    %cst_42 = arith.constant dense<0.000000e+00> : vector<60x24xf32>
    %39 = tpu.matmul %38, %28, %cst_42 {dimension_numbers = #tpu.dot_dimension_numbers<[1], [0], [0], [1], [0, 0, 1, 1], [], []>} : vector<60x32xf32>, vector<32x24xf32>, vector<60x24xf32> -> vector<60x24xf32>
    %40 = vector.broadcast %29 : vector<1x24xf32> to vector<60x24xf32>
    %41 = arith.addf %39, %40 : vector<60x24xf32>
    %cst_43 = arith.constant 0.000000e+00 : f32
    %42 = vector.broadcast %cst_43 : f32 to vector<60x24xf32>
    %43 = arith.maximumf %41, %42 : vector<60x24xf32>
    %cst_44 = arith.constant dense<0.000000e+00> : vector<60x24xf32>
    %44 = tpu.matmul %24, %43, %cst_44 {dimension_numbers = #tpu.dot_dimension_numbers<[1], [0], [0], [1], [0, 0, 1, 1], [], []>} : vector<60x60xf32>, vector<60x24xf32>, vector<60x24xf32> -> vector<60x24xf32>
    %cst_45 = arith.constant dense<0.000000e+00> : vector<60x16xf32>
    %45 = tpu.matmul %44, %30, %cst_45 {dimension_numbers = #tpu.dot_dimension_numbers<[1], [0], [0], [1], [0, 0, 1, 1], [], []>} : vector<60x24xf32>, vector<24x16xf32>, vector<60x16xf32> -> vector<60x16xf32>
    %46 = vector.broadcast %31 : vector<1x16xf32> to vector<60x16xf32>
    %47 = arith.addf %45, %46 : vector<60x16xf32>
    %c0_46 = arith.constant 0 : index
    %c0_47 = arith.constant 0 : index
    %48 = vector.load %arg16[%c0_46, %c0_47] : memref<16x16xf32, #tpu.memory_space<vmem>>, vector<16x16xf32>
    %49 = tpu.iota {dimensions = array<i32: 0>} : vector<21x1xi32>
    %c12_i32 = arith.constant 12 : i32
    %50 = vector.broadcast %c12_i32 : i32 to vector<21x1xi32>
    %51 = arith.cmpi slt, %49, %50 : vector<21x1xi32>
    %52 = arith.extui %51 : vector<21x1xi1> to vector<21x1xi32>
    %53 = arith.sitofp %52 : vector<21x1xi32> to vector<21x1xf32>
    %cst_48 = arith.constant 1.000000e+00 : f32
    %54 = vector.broadcast %cst_48 : f32 to vector<21x1xf32>
    %55 = arith.subf %54, %53 : vector<21x1xf32>
    %cst_49 = arith.constant dense<0.000000e+00> : vector<21x16xf32>
    %56 = tpu.matmul %23, %48, %cst_49 {dimension_numbers = #tpu.dot_dimension_numbers<[1], [0], [0], [1], [0, 0, 1, 1], [], []>} : vector<21x16xf32>, vector<16x16xf32>, vector<21x16xf32> -> vector<21x16xf32>
    %57 = vector.broadcast %53 : vector<21x1xf32> to vector<21x16xf32>
    %58 = arith.mulf %56, %57 : vector<21x16xf32>
    %cst_50 = arith.constant dense<0.000000e+00> : vector<16xf32>
    %59 = vector.multi_reduction <add>, %58, %cst_50 [0] : vector<21x16xf32> to vector<16xf32>
    %60 = vector.shape_cast %59 : vector<16xf32> to vector<1x16xf32>
    %cst_51 = arith.constant 0.0833333358 : f32
    %61 = vector.broadcast %cst_51 : f32 to vector<1x16xf32>
    %62 = arith.mulf %60, %61 : vector<1x16xf32>
    %63 = math.tanh %62 : vector<1x16xf32>
    %64 = vector.broadcast %55 : vector<21x1xf32> to vector<21x16xf32>
    %65 = arith.mulf %56, %64 : vector<21x16xf32>
    %cst_52 = arith.constant dense<0.000000e+00> : vector<16xf32>
    %66 = vector.multi_reduction <add>, %65, %cst_52 [0] : vector<21x16xf32> to vector<16xf32>
    %67 = vector.shape_cast %66 : vector<16xf32> to vector<1x16xf32>
    %cst_53 = arith.constant 0.111111112 : f32
    %68 = vector.broadcast %cst_53 : f32 to vector<1x16xf32>
    %69 = arith.mulf %67, %68 : vector<1x16xf32>
    %70 = math.tanh %69 : vector<1x16xf32>
    %71 = vector.broadcast %53 : vector<21x1xf32> to vector<21x16xf32>
    %72 = vector.broadcast %63 : vector<1x16xf32> to vector<21x16xf32>
    %73 = arith.mulf %71, %72 : vector<21x16xf32>
    %74 = vector.broadcast %55 : vector<21x1xf32> to vector<21x16xf32>
    %75 = vector.broadcast %70 : vector<1x16xf32> to vector<21x16xf32>
    %76 = arith.mulf %74, %75 : vector<21x16xf32>
    %77 = arith.addf %73, %76 : vector<21x16xf32>
    %78 = arith.mulf %23, %77 : vector<21x16xf32>
    %cst_54 = arith.constant dense<0.000000e+00> : vector<21xf32>
    %79 = vector.multi_reduction <add>, %78, %cst_54 [1] : vector<21x16xf32> to vector<21xf32>
    %80 = vector.shape_cast %79 : vector<21xf32> to vector<21x1xf32>
    %81 = arith.negf %80 : vector<21x1xf32>
    %82 = math.exp %81 : vector<21x1xf32>
    %cst_55 = arith.constant 1.000000e+00 : f32
    %83 = vector.broadcast %cst_55 : f32 to vector<21x1xf32>
    %84 = arith.addf %83, %82 : vector<21x1xf32>
    %85 = arith.divf %83, %84 : vector<21x1xf32>
    %86 = vector.broadcast %85 : vector<21x1xf32> to vector<21x16xf32>
    %87 = arith.mulf %86, %23 : vector<21x16xf32>
    %88 = vector.broadcast %53 : vector<21x1xf32> to vector<21x16xf32>
    %89 = arith.mulf %87, %88 : vector<21x16xf32>
    %cst_56 = arith.constant dense<0.000000e+00> : vector<16xf32>
    %90 = vector.multi_reduction <add>, %89, %cst_56 [0] : vector<21x16xf32> to vector<16xf32>
    %91 = vector.shape_cast %90 : vector<16xf32> to vector<1x16xf32>
    %92 = vector.broadcast %55 : vector<21x1xf32> to vector<21x16xf32>
    %93 = arith.mulf %87, %92 : vector<21x16xf32>
    %cst_57 = arith.constant dense<0.000000e+00> : vector<16xf32>
    %94 = vector.multi_reduction <add>, %93, %cst_57 [0] : vector<21x16xf32> to vector<16xf32>
    %95 = vector.shape_cast %94 : vector<16xf32> to vector<1x16xf32>
    %c0_58 = arith.constant 0 : index
    %c0_59 = arith.constant 0 : index
    %96 = vector.load %arg17[%c0_58, %c0_59] : memref<16x16xf32, #tpu.memory_space<vmem>>, vector<16x16xf32>
    %97 = tpu.iota {dimensions = array<i32: 0>} : vector<60x1xi32>
    %c36_i32 = arith.constant 36 : i32
    %98 = vector.broadcast %c36_i32 : i32 to vector<60x1xi32>
    %99 = arith.cmpi slt, %97, %98 : vector<60x1xi32>
    %100 = arith.extui %99 : vector<60x1xi1> to vector<60x1xi32>
    %101 = arith.sitofp %100 : vector<60x1xi32> to vector<60x1xf32>
    %cst_60 = arith.constant 1.000000e+00 : f32
    %102 = vector.broadcast %cst_60 : f32 to vector<60x1xf32>
    %103 = arith.subf %102, %101 : vector<60x1xf32>
    %cst_61 = arith.constant dense<0.000000e+00> : vector<60x16xf32>
    %104 = tpu.matmul %47, %96, %cst_61 {dimension_numbers = #tpu.dot_dimension_numbers<[1], [0], [0], [1], [0, 0, 1, 1], [], []>} : vector<60x16xf32>, vector<16x16xf32>, vector<60x16xf32> -> vector<60x16xf32>
    %105 = vector.broadcast %101 : vector<60x1xf32> to vector<60x16xf32>
    %106 = arith.mulf %104, %105 : vector<60x16xf32>
    %cst_62 = arith.constant dense<0.000000e+00> : vector<16xf32>
    %107 = vector.multi_reduction <add>, %106, %cst_62 [0] : vector<60x16xf32> to vector<16xf32>
    %108 = vector.shape_cast %107 : vector<16xf32> to vector<1x16xf32>
    %cst_63 = arith.constant 0.027777778 : f32
    %109 = vector.broadcast %cst_63 : f32 to vector<1x16xf32>
    %110 = arith.mulf %108, %109 : vector<1x16xf32>
    %111 = math.tanh %110 : vector<1x16xf32>
    %112 = vector.broadcast %103 : vector<60x1xf32> to vector<60x16xf32>
    %113 = arith.mulf %104, %112 : vector<60x16xf32>
    %cst_64 = arith.constant dense<0.000000e+00> : vector<16xf32>
    %114 = vector.multi_reduction <add>, %113, %cst_64 [0] : vector<60x16xf32> to vector<16xf32>
    %115 = vector.shape_cast %114 : vector<16xf32> to vector<1x16xf32>
    %cst_65 = arith.constant 0.0416666679 : f32
    %116 = vector.broadcast %cst_65 : f32 to vector<1x16xf32>
    %117 = arith.mulf %115, %116 : vector<1x16xf32>
    %118 = math.tanh %117 : vector<1x16xf32>
    %119 = vector.broadcast %101 : vector<60x1xf32> to vector<60x16xf32>
    %120 = vector.broadcast %111 : vector<1x16xf32> to vector<60x16xf32>
    %121 = arith.mulf %119, %120 : vector<60x16xf32>
    %122 = vector.broadcast %103 : vector<60x1xf32> to vector<60x16xf32>
    %123 = vector.broadcast %118 : vector<1x16xf32> to vector<60x16xf32>
    %124 = arith.mulf %122, %123 : vector<60x16xf32>
    %125 = arith.addf %121, %124 : vector<60x16xf32>
    %126 = arith.mulf %47, %125 : vector<60x16xf32>
    %cst_66 = arith.constant dense<0.000000e+00> : vector<60xf32>
    %127 = vector.multi_reduction <add>, %126, %cst_66 [1] : vector<60x16xf32> to vector<60xf32>
    %128 = vector.shape_cast %127 : vector<60xf32> to vector<60x1xf32>
    %129 = arith.negf %128 : vector<60x1xf32>
    %130 = math.exp %129 : vector<60x1xf32>
    %cst_67 = arith.constant 1.000000e+00 : f32
    %131 = vector.broadcast %cst_67 : f32 to vector<60x1xf32>
    %132 = arith.addf %131, %130 : vector<60x1xf32>
    %133 = arith.divf %131, %132 : vector<60x1xf32>
    %134 = vector.broadcast %133 : vector<60x1xf32> to vector<60x16xf32>
    %135 = arith.mulf %134, %47 : vector<60x16xf32>
    %136 = vector.broadcast %101 : vector<60x1xf32> to vector<60x16xf32>
    %137 = arith.mulf %135, %136 : vector<60x16xf32>
    %cst_68 = arith.constant dense<0.000000e+00> : vector<16xf32>
    %138 = vector.multi_reduction <add>, %137, %cst_68 [0] : vector<60x16xf32> to vector<16xf32>
    %139 = vector.shape_cast %138 : vector<16xf32> to vector<1x16xf32>
    %140 = vector.broadcast %103 : vector<60x1xf32> to vector<60x16xf32>
    %141 = arith.mulf %135, %140 : vector<60x16xf32>
    %cst_69 = arith.constant dense<0.000000e+00> : vector<16xf32>
    %142 = vector.multi_reduction <add>, %141, %cst_69 [0] : vector<60x16xf32> to vector<16xf32>
    %143 = vector.shape_cast %142 : vector<16xf32> to vector<1x16xf32>
    %c0_70 = arith.constant 0 : index
    %c0_71 = arith.constant 0 : index
    %144 = vector.load %arg18[%c0_70, %c0_71] : memref<16x256xf32, #tpu.memory_space<vmem>>, vector<16x256xf32>
    %c0_72 = arith.constant 0 : index
    %c0_73 = arith.constant 0 : index
    %145 = vector.load %arg19[%c0_72, %c0_73] : memref<16x256xf32, #tpu.memory_space<vmem>>, vector<16x256xf32>
    %c0_74 = arith.constant 0 : index
    %c0_75 = arith.constant 0 : index
    %146 = vector.load %arg20[%c0_74, %c0_75] : memref<256x16xf32, #tpu.memory_space<vmem>>, vector<256x16xf32>
    %c0_76 = arith.constant 0 : index
    %c0_77 = arith.constant 0 : index
    %147 = vector.load %arg21[%c0_76, %c0_77] : memref<32x16xf32, #tpu.memory_space<vmem>>, vector<16x16xf32>
    %c16 = arith.constant 16 : index
    %c0_78 = arith.constant 0 : index
    %148 = vector.load %arg21[%c16, %c0_78] : memref<32x16xf32, #tpu.memory_space<vmem>>, vector<16x16xf32>
    %c0_79 = arith.constant 0 : index
    %c0_80 = arith.constant 0 : index
    %149 = vector.load %arg22[%c0_79, %c0_80] : memref<1x16xf32, #tpu.memory_space<vmem>>, vector<1x16xf32>
    %cst_81 = arith.constant dense<0.000000e+00> : vector<1x256xf32>
    %150 = tpu.matmul %91, %144, %cst_81 {dimension_numbers = #tpu.dot_dimension_numbers<[1], [0], [0], [1], [0, 0, 1, 1], [], []>} : vector<1x16xf32>, vector<16x256xf32>, vector<1x256xf32> -> vector<1x256xf32>
    %cst_82 = arith.constant dense<0.000000e+00> : vector<1x256xf32>
    %151 = tpu.matmul %95, %145, %cst_82 {dimension_numbers = #tpu.dot_dimension_numbers<[1], [0], [0], [1], [0, 0, 1, 1], [], []>} : vector<1x16xf32>, vector<16x256xf32>, vector<1x256xf32> -> vector<1x256xf32>
    %152 = arith.mulf %150, %151 : vector<1x256xf32>
    %cst_83 = arith.constant dense<0.000000e+00> : vector<1x16xf32>
    %153 = tpu.matmul %152, %146, %cst_83 {dimension_numbers = #tpu.dot_dimension_numbers<[1], [0], [0], [1], [0, 0, 1, 1], [], []>} : vector<1x256xf32>, vector<256x16xf32>, vector<1x16xf32> -> vector<1x16xf32>
    %cst_84 = arith.constant dense<0.000000e+00> : vector<1x16xf32>
    %154 = tpu.matmul %91, %147, %cst_84 {dimension_numbers = #tpu.dot_dimension_numbers<[1], [0], [0], [1], [0, 0, 1, 1], [], []>} : vector<1x16xf32>, vector<16x16xf32>, vector<1x16xf32> -> vector<1x16xf32>
    %cst_85 = arith.constant dense<0.000000e+00> : vector<1x16xf32>
    %155 = tpu.matmul %95, %148, %cst_85 {dimension_numbers = #tpu.dot_dimension_numbers<[1], [0], [0], [1], [0, 0, 1, 1], [], []>} : vector<1x16xf32>, vector<16x16xf32>, vector<1x16xf32> -> vector<1x16xf32>
    %156 = arith.addf %154, %155 : vector<1x16xf32>
    %157 = arith.addf %153, %156 : vector<1x16xf32>
    %158 = arith.addf %157, %149 : vector<1x16xf32>
    %cst_86 = arith.constant 0.000000e+00 : f32
    %159 = vector.broadcast %cst_86 : f32 to vector<1x16xf32>
    %160 = arith.maximumf %158, %159 : vector<1x16xf32>
    %cst_87 = arith.constant dense<0.000000e+00> : vector<1x256xf32>
    %161 = tpu.matmul %139, %144, %cst_87 {dimension_numbers = #tpu.dot_dimension_numbers<[1], [0], [0], [1], [0, 0, 1, 1], [], []>} : vector<1x16xf32>, vector<16x256xf32>, vector<1x256xf32> -> vector<1x256xf32>
    %cst_88 = arith.constant dense<0.000000e+00> : vector<1x256xf32>
    %162 = tpu.matmul %143, %145, %cst_88 {dimension_numbers = #tpu.dot_dimension_numbers<[1], [0], [0], [1], [0, 0, 1, 1], [], []>} : vector<1x16xf32>, vector<16x256xf32>, vector<1x256xf32> -> vector<1x256xf32>
    %163 = arith.mulf %161, %162 : vector<1x256xf32>
    %cst_89 = arith.constant dense<0.000000e+00> : vector<1x16xf32>
    %164 = tpu.matmul %163, %146, %cst_89 {dimension_numbers = #tpu.dot_dimension_numbers<[1], [0], [0], [1], [0, 0, 1, 1], [], []>} : vector<1x256xf32>, vector<256x16xf32>, vector<1x16xf32> -> vector<1x16xf32>
    %cst_90 = arith.constant dense<0.000000e+00> : vector<1x16xf32>
    %165 = tpu.matmul %139, %147, %cst_90 {dimension_numbers = #tpu.dot_dimension_numbers<[1], [0], [0], [1], [0, 0, 1, 1], [], []>} : vector<1x16xf32>, vector<16x16xf32>, vector<1x16xf32> -> vector<1x16xf32>
    %cst_91 = arith.constant dense<0.000000e+00> : vector<1x16xf32>
    %166 = tpu.matmul %143, %148, %cst_91 {dimension_numbers = #tpu.dot_dimension_numbers<[1], [0], [0], [1], [0, 0, 1, 1], [], []>} : vector<1x16xf32>, vector<16x16xf32>, vector<1x16xf32> -> vector<1x16xf32>
    %167 = arith.addf %165, %166 : vector<1x16xf32>
    %168 = arith.addf %164, %167 : vector<1x16xf32>
    %169 = arith.addf %168, %149 : vector<1x16xf32>
    %cst_92 = arith.constant 0.000000e+00 : f32
    %170 = vector.broadcast %cst_92 : f32 to vector<1x16xf32>
    %171 = arith.maximumf %169, %170 : vector<1x16xf32>
    %c0_93 = arith.constant 0 : index
    %c0_94 = arith.constant 0 : index
    %172 = vector.load %arg27[%c0_93, %c0_94] : memref<12x21xf32, #tpu.memory_space<vmem>>, vector<12x21xf32>
    %cst_95 = arith.constant dense<0.000000e+00> : vector<12x16xf32>
    %173 = tpu.matmul %172, %23, %cst_95 {dimension_numbers = #tpu.dot_dimension_numbers<[1], [0], [0], [1], [0, 0, 1, 1], [], []>} : vector<12x21xf32>, vector<21x16xf32>, vector<12x16xf32> -> vector<12x16xf32>
    %c0_96 = arith.constant 0 : index
    %c0_97 = arith.constant 0 : index
    %174 = vector.load %arg28[%c0_96, %c0_97] : memref<12x21xf32, #tpu.memory_space<vmem>>, vector<12x21xf32>
    %cst_98 = arith.constant dense<0.000000e+00> : vector<12x16xf32>
    %175 = tpu.matmul %174, %23, %cst_98 {dimension_numbers = #tpu.dot_dimension_numbers<[1], [0], [0], [1], [0, 0, 1, 1], [], []>} : vector<12x21xf32>, vector<21x16xf32>, vector<12x16xf32> -> vector<12x16xf32>
    %cst_99 = arith.constant dense<0.000000e+00> : vector<12x12xf32>
    %176 = tpu.matmul %173, %175, %cst_99 {dimension_numbers = #tpu.dot_dimension_numbers<[1], [1], [0], [0], [0, 0, 1, 0], [], []>} : vector<12x16xf32>, vector<12x16xf32>, vector<12x12xf32> -> vector<12x12xf32>
    %177 = vector.shape_cast %176 : vector<12x12xf32> to vector<1x12x12xf32>
    %cst_100 = arith.constant dense<0x7F800000> : vector<1xf32>
    %178 = vector.multi_reduction <minimumf>, %177, %cst_100 [1, 2] : vector<1x12x12xf32> to vector<1xf32>
    %179 = vector.shape_cast %178 : vector<1xf32> to vector<1x1x1xf32>
    %180 = vector.extract %179[0, 0, 0] : f32 from vector<1x1x1xf32>
    %181 = vector.broadcast %180 : f32 to vector<1x1xf32>
    %182 = vector.shape_cast %176 : vector<12x12xf32> to vector<1x12x12xf32>
    %cst_101 = arith.constant dense<0xFF800000> : vector<1xf32>
    %183 = vector.multi_reduction <maximumf>, %182, %cst_101 [1, 2] : vector<1x12x12xf32> to vector<1xf32>
    %184 = vector.shape_cast %183 : vector<1xf32> to vector<1x1x1xf32>
    %185 = vector.extract %184[0, 0, 0] : f32 from vector<1x1x1xf32>
    %186 = vector.broadcast %185 : f32 to vector<1x1xf32>
    %187 = arith.subf %186, %181 : vector<1x1xf32>
    %cst_102 = arith.constant 9.99999996E-13 : f32
    %188 = vector.broadcast %cst_102 : f32 to vector<1x1xf32>
    %189 = arith.maximumf %187, %188 : vector<1x1xf32>
    %cst_103 = arith.constant 1.600000e+01 : f32
    %190 = vector.broadcast %cst_103 : f32 to vector<1x1xf32>
    %191 = arith.divf %190, %189 : vector<1x1xf32>
    %192 = vector.broadcast %181 : vector<1x1xf32> to vector<12x12xf32>
    %193 = arith.subf %176, %192 : vector<12x12xf32>
    %194 = vector.broadcast %191 : vector<1x1xf32> to vector<12x12xf32>
    %195 = arith.mulf %193, %194 : vector<12x12xf32>
    %196 = math.floor %195 : vector<12x12xf32>
    %cst_104 = arith.constant 0.000000e+00 : f32
    %cst_105 = arith.constant 1.500000e+01 : f32
    %197 = vector.broadcast %cst_104 : f32 to vector<12x12xf32>
    %198 = arith.maximumf %197, %196 : vector<12x12xf32>
    %199 = vector.broadcast %cst_105 : f32 to vector<12x12xf32>
    %200 = arith.minimumf %199, %198 : vector<12x12xf32>
    %c0_106 = arith.constant 0 : index
    %c0_107 = arith.constant 0 : index
    %201 = vector.load %arg29[%c0_106, %c0_107] : memref<12x192xf32, #tpu.memory_space<vmem>>, vector<12x192xf32>
    %cst_108 = arith.constant dense<0.000000e+00> : vector<12x192xf32>
    %202 = tpu.matmul %200, %201, %cst_108 {dimension_numbers = #tpu.dot_dimension_numbers<[1], [0], [0], [1], [0, 0, 1, 1], [], []>} : vector<12x12xf32>, vector<12x192xf32>, vector<12x192xf32> -> vector<12x192xf32>
    %c0_109 = arith.constant 0 : index
    %c0_110 = arith.constant 0 : index
    %203 = vector.load %arg30[%c0_109, %c0_110] : memref<1x192xf32, #tpu.memory_space<vmem>>, vector<1x192xf32>
    %204 = vector.broadcast %203 : vector<1x192xf32> to vector<12x192xf32>
    %205 = arith.cmpf oeq, %202, %204 : vector<12x192xf32>
    %206 = arith.extui %205 : vector<12x192xi1> to vector<12x192xi32>
    %207 = arith.sitofp %206 : vector<12x192xi32> to vector<12x192xf32>
    %c0_111 = arith.constant 0 : index
    %c0_112 = arith.constant 0 : index
    %208 = vector.load %arg31[%c0_111, %c0_112] : memref<192x16xf32, #tpu.memory_space<vmem>>, vector<192x16xf32>
    %cst_113 = arith.constant dense<0.000000e+00> : vector<12x16xf32>
    %209 = tpu.matmul %207, %208, %cst_113 {dimension_numbers = #tpu.dot_dimension_numbers<[1], [0], [0], [1], [0, 0, 1, 1], [], []>} : vector<12x192xf32>, vector<192x16xf32>, vector<12x16xf32> -> vector<12x16xf32>
    %cst_114 = arith.constant dense<0.000000e+00> : vector<16xf32>
    %210 = vector.multi_reduction <add>, %209, %cst_114 [0] : vector<12x16xf32> to vector<16xf32>
    %211 = vector.shape_cast %210 : vector<16xf32> to vector<1x16xf32>
    %212 = vector.shape_cast %211 : vector<1x16xf32> to vector<1x1x16xf32>
    %cst_115 = arith.constant dense<0.000000e+00> : vector<1xf32>
    %213 = vector.multi_reduction <add>, %212, %cst_115 [1, 2] : vector<1x1x16xf32> to vector<1xf32>
    %214 = vector.shape_cast %213 : vector<1xf32> to vector<1x1x1xf32>
    %215 = vector.extract %214[0, 0, 0] : f32 from vector<1x1x1xf32>
    %216 = vector.broadcast %215 : f32 to vector<1x1xf32>
    %217 = vector.broadcast %216 : vector<1x1xf32> to vector<1x16xf32>
    %218 = arith.divf %211, %217 : vector<1x16xf32>
    %c0_116 = arith.constant 0 : index
    %c0_117 = arith.constant 0 : index
    %219 = vector.load %arg23[%c0_116, %c0_117] : memref<48x16xf32, #tpu.memory_space<vmem>>, vector<16x16xf32>
    %cst_118 = arith.constant dense<0.000000e+00> : vector<1x16xf32>
    %220 = tpu.matmul %160, %219, %cst_118 {dimension_numbers = #tpu.dot_dimension_numbers<[1], [0], [0], [1], [0, 0, 1, 1], [], []>} : vector<1x16xf32>, vector<16x16xf32>, vector<1x16xf32> -> vector<1x16xf32>
    %c16_119 = arith.constant 16 : index
    %c0_120 = arith.constant 0 : index
    %221 = vector.load %arg23[%c16_119, %c0_120] : memref<48x16xf32, #tpu.memory_space<vmem>>, vector<16x16xf32>
    %cst_121 = arith.constant dense<0.000000e+00> : vector<1x16xf32>
    %222 = tpu.matmul %171, %221, %cst_121 {dimension_numbers = #tpu.dot_dimension_numbers<[1], [0], [0], [1], [0, 0, 1, 1], [], []>} : vector<1x16xf32>, vector<16x16xf32>, vector<1x16xf32> -> vector<1x16xf32>
    %223 = arith.addf %220, %222 : vector<1x16xf32>
    %c32 = arith.constant 32 : index
    %c0_122 = arith.constant 0 : index
    %224 = vector.load %arg23[%c32, %c0_122] : memref<48x16xf32, #tpu.memory_space<vmem>>, vector<16x16xf32>
    %cst_123 = arith.constant dense<0.000000e+00> : vector<1x16xf32>
    %225 = tpu.matmul %218, %224, %cst_123 {dimension_numbers = #tpu.dot_dimension_numbers<[1], [0], [0], [1], [0, 0, 1, 1], [], []>} : vector<1x16xf32>, vector<16x16xf32>, vector<1x16xf32> -> vector<1x16xf32>
    %226 = arith.addf %223, %225 : vector<1x16xf32>
    %c0_124 = arith.constant 0 : index
    %c0_125 = arith.constant 0 : index
    %227 = vector.load %arg24[%c0_124, %c0_125] : memref<1x16xf32, #tpu.memory_space<vmem>>, vector<1x16xf32>
    %228 = arith.addf %226, %227 : vector<1x16xf32>
    %cst_126 = arith.constant 0.000000e+00 : f32
    %229 = vector.broadcast %cst_126 : f32 to vector<1x16xf32>
    %230 = arith.maximumf %228, %229 : vector<1x16xf32>
    %c0_127 = arith.constant 0 : index
    %c0_128 = arith.constant 0 : index
    %231 = vector.load %arg25[%c0_127, %c0_128] : memref<16x1xf32, #tpu.memory_space<vmem>>, vector<16x1xf32>
    %cst_129 = arith.constant dense<0.000000e+00> : vector<1x1xf32>
    %232 = tpu.matmul %230, %231, %cst_129 {dimension_numbers = #tpu.dot_dimension_numbers<[1], [0], [0], [1], [0, 0, 1, 1], [], []>} : vector<1x16xf32>, vector<16x1xf32>, vector<1x1xf32> -> vector<1x1xf32>
    %c0_130 = arith.constant 0 : index
    %c0_131 = arith.constant 0 : index
    %233 = vector.load %arg26[%c0_130, %c0_131] : memref<1x1xf32, #tpu.memory_space<vmem>>, vector<1x1xf32>
    %234 = arith.addf %232, %233 : vector<1x1xf32>
    %235 = arith.negf %234 : vector<1x1xf32>
    %236 = math.exp %235 : vector<1x1xf32>
    %cst_132 = arith.constant 1.000000e+00 : f32
    %237 = vector.broadcast %cst_132 : f32 to vector<1x1xf32>
    %238 = arith.addf %237, %236 : vector<1x1xf32>
    %239 = arith.divf %237, %238 : vector<1x1xf32>
    %c0_133 = arith.constant 0 : index
    %c0_134 = arith.constant 0 : index
    %240 = vector.load %arg32[%c0_133, %c0_134] : memref<1x1xf32, #tpu.memory_space<vmem>>, vector<1x1xf32>
    tpu.vector_store %arg32[%c0_133, %c0_134], %239 {strides = array<i32>} : memref<1x1xf32, #tpu.memory_space<vmem>>, vector<1x1xf32>,
    return
  }
}

</mosaic_0001>

<llo_original>
// kernel: tpu_custom_call.1
$region0: #{tpu_custom_call.1}
  #allocation0 [shape = 'u32[]', space=smem, size = 0x4, offset = 0x4, fixed_abs, tag = 'smem constant byte address 0x4 - core index']
  #allocation1 [shape = 'u32[72,128]{1,0:T(1,128)}', space=vmem, size = 0x9000, scoped, tag = 'internal scratch']
  #allocation2 [shape = 'f32[1,1]{1,0:T(1,128)S(1)}', space=vmem, size = 0x200, scoped, tag = 'scoped memory for tpu_custom_call.1']
  %s0 = inlined_call_operand.smem [shape: u32[33], index: -1, kind: input, shape index: {}]
  %s1 = sld [smem:[%s0]]
  %s2 = scalar_lea.smem %s0, 1
  %s3 = sld [smem:[%s2]]
  %s4 = scalar_lea.smem %s0, 2
  %s5 = sld [smem:[%s4]]
  %s6 = scalar_lea.smem %s0, 3
  %s7 = sld [smem:[%s6]]
  %s8 = scalar_lea.smem %s0, 4
  %s9 = sld [smem:[%s8]]
  %s10 = scalar_lea.smem %s0, 5
  %s11 = sld [smem:[%s10]]
  %s12 = scalar_lea.smem %s0, 6
  %s13 = sld [smem:[%s12]]
  %s14 = scalar_lea.smem %s0, 7
  %s15 = sld [smem:[%s14]]
  %s16 = scalar_lea.smem %s0, 8
  %s17 = sld [smem:[%s16]]
  %s18 = scalar_lea.smem %s0, 9
  %s19 = sld [smem:[%s18]]
  %s20 = scalar_lea.smem %s0, 10
  %s21 = sld [smem:[%s20]]
  %s22 = scalar_lea.smem %s0, 11
  %s23 = sld [smem:[%s22]]
  %s24 = scalar_lea.smem %s0, 12
  %s25 = sld [smem:[%s24]]
  %s26 = scalar_lea.smem %s0, 13
  %s27 = sld [smem:[%s26]]
  %s28 = scalar_lea.smem %s0, 14
  %s29 = sld [smem:[%s28]]
  %s30 = scalar_lea.smem %s0, 15
  %s31 = sld [smem:[%s30]]
  %s32 = scalar_lea.smem %s0, 16
  %s33 = sld [smem:[%s32]]
  %s34 = scalar_lea.smem %s0, 17
  %s35 = sld [smem:[%s34]]
  %s36 = scalar_lea.smem %s0, 18
  %s37 = sld [smem:[%s36]]
  %s38 = scalar_lea.smem %s0, 19
  %s39 = sld [smem:[%s38]]
  %s40 = scalar_lea.smem %s0, 20
  %s41 = sld [smem:[%s40]]
  %s42 = scalar_lea.smem %s0, 21
  %s43 = sld [smem:[%s42]]
  %s44 = scalar_lea.smem %s0, 22
  %s45 = sld [smem:[%s44]]
  %s46 = scalar_lea.smem %s0, 23
  %s47 = sld [smem:[%s46]]
  %s48 = scalar_lea.smem %s0, 24
  %s49 = sld [smem:[%s48]]
  %s50 = scalar_lea.smem %s0, 25
  %s51 = sld [smem:[%s50]]
  %s52 = scalar_lea.smem %s0, 26
  %s53 = sld [smem:[%s52]]
  %s54 = scalar_lea.smem %s0, 27
  %s55 = sld [smem:[%s54]]
  %s56 = scalar_lea.smem %s0, 28
  %s57 = sld [smem:[%s56]]
  %s58 = scalar_lea.smem %s0, 29
  %s59 = sld [smem:[%s58]]
  %s60 = scalar_lea.smem %s0, 30
  %s61 = sld [smem:[%s60]]
  %s62 = scalar_lea.smem %s0, 31
  %s63 = sld [smem:[%s62]]
  %s64 = scalar_lea.smem %s0, 32
  %s65 = sld [smem:[%s64]]
  %s66 = sld [smem:[#allocation0]]
  $region138: #{tpu_custom_call.1} parent=0
    _
  %s68 = ssub.s32 1, %s66
  %s69 = scalar_select 0, %s68, %s66
  %v70 = vstv %s53
  %71 = vst [vmem:[#allocation2] sm:$0x1] %v70
  $region1: #{tpu_custom_call.1} parent=0
    #allocation3 [shape = 'u8[512]{0}', space=vmem, size = 0x400, scoped, tag = 'output window, operand 0, single buffered']
    #allocation4 [shape = 's32[1]{0}', space=sflag, size = 0x4, scoped, tag = 'scoped memory for tpu_custom_call.1']
    %72 = vsyncpa [#allocation4], 0
    // Predicated region
    $region2: #{tpu_custom_call.1} parent=1 // pred_check
      _
    $region3: #{tpu_custom_call.1} parent=1 // pred_check_branch
      %74 = sbr.rel (0) target = $region5
    $region4: #{tpu_custom_call.1} parent=1 // pred_region
      _
    $region5: #{tpu_custom_call.1} parent=1 // pred_fallthru
      _
    // Predicated region
    $region6: #{tpu_custom_call.1} parent=1 // pred_check
      _
    $region7: #{tpu_custom_call.1} parent=1 // pred_check_branch
      %76 = sbr.rel (0) target = $region9
    $region8: #{tpu_custom_call.1} parent=1 // pred_region
      _
    $region9: #{tpu_custom_call.1} parent=1 // pred_fallthru
      _
    // Predicated region
    $region10: #{tpu_custom_call.1} parent=1 // pred_check
      _
    $region11: #{tpu_custom_call.1} parent=1 // pred_check_branch
      %78 = sbr.rel (0) target = $region13
    $region12: #{tpu_custom_call.1} parent=1 // pred_region
      _
    $region13: #{tpu_custom_call.1} parent=1 // pred_fallthru
      _
    // Predicated region
    $region14: #{tpu_custom_call.1} parent=1 // pred_check
      _
    $region15: #{tpu_custom_call.1} parent=1 // pred_check_branch
      %80 = sbr.rel (0) target = $region17
    $region16: #{tpu_custom_call.1} parent=1 // pred_region
      _
    $region17: #{tpu_custom_call.1} parent=1 // pred_fallthru
      _
    // Predicated region
    $region18: #{tpu_custom_call.1} parent=1 // pred_check
      _
    $region19: #{tpu_custom_call.1} parent=1 // pred_check_branch
      %82 = sbr.rel (0) target = $region21
    $region20: #{tpu_custom_call.1} parent=1 // pred_region
      _
    $region21: #{tpu_custom_call.1} parent=1 // pred_fallthru
      _
    // Predicated region
    $region22: #{tpu_custom_call.1} parent=1 // pred_check
      _
    $region23: #{tpu_custom_call.1} parent=1 // pred_check_branch
      %84 = sbr.rel (0) target = $region25
    $region24: #{tpu_custom_call.1} parent=1 // pred_region
      _
    $region25: #{tpu_custom_call.1} parent=1 // pred_fallthru
      _
    // Predicated region
    $region26: #{tpu_custom_call.1} parent=1 // pred_check
      _
    $region27: #{tpu_custom_call.1} parent=1 // pred_check_branch
      %86 = sbr.rel (0) target = $region29
    $region28: #{tpu_custom_call.1} parent=1 // pred_region
      _
    $region29: #{tpu_custom_call.1} parent=1 // pred_fallthru
      _
    // Predicated region
    $region30: #{tpu_custom_call.1} parent=1 // pred_check
      _
    $region31: #{tpu_custom_call.1} parent=1 // pred_check_branch
      %88 = sbr.rel (0) target = $region33
    $region32: #{tpu_custom_call.1} parent=1 // pred_region
      _
    $region33: #{tpu_custom_call.1} parent=1 // pred_fallthru
      _
    // Predicated region
    $region34: #{tpu_custom_call.1} parent=1 // pred_check
      _
    $region35: #{tpu_custom_call.1} parent=1 // pred_check_branch
      %90 = sbr.rel (0) target = $region37
    $region36: #{tpu_custom_call.1} parent=1 // pred_region
      _
    $region37: #{tpu_custom_call.1} parent=1 // pred_fallthru
      _
    // Predicated region
    $region38: #{tpu_custom_call.1} parent=1 // pred_check
      _
    $region39: #{tpu_custom_call.1} parent=1 // pred_check_branch
      %92 = sbr.rel (0) target = $region41
    $region40: #{tpu_custom_call.1} parent=1 // pred_region
      _
    $region41: #{tpu_custom_call.1} parent=1 // pred_fallthru
      _
    // Predicated region
    $region42: #{tpu_custom_call.1} parent=1 // pred_check
      _
    $region43: #{tpu_custom_call.1} parent=1 // pred_check_branch
      %94 = sbr.rel (0) target = $region45
    $region44: #{tpu_custom_call.1} parent=1 // pred_region
      _
    $region45: #{tpu_custom_call.1} parent=1 // pred_fallthru
      _
    // Predicated region
    $region46: #{tpu_custom_call.1} parent=1 // pred_check
      _
    $region47: #{tpu_custom_call.1} parent=1 // pred_check_branch
      %96 = sbr.rel (0) target = $region49
    $region48: #{tpu_custom_call.1} parent=1 // pred_region
      _
    $region49: #{tpu_custom_call.1} parent=1 // pred_fallthru
      _
    // Predicated region
    $region50: #{tpu_custom_call.1} parent=1 // pred_check
      _
    $region51: #{tpu_custom_call.1} parent=1 // pred_check_branch
      %98 = sbr.rel (0) target = $region53
    $region52: #{tpu_custom_call.1} parent=1 // pred_region
      _
    $region53: #{tpu_custom_call.1} parent=1 // pred_fallthru
      _
    // Predicated region
    $region54: #{tpu_custom_call.1} parent=1 // pred_check
      _
    $region55: #{tpu_custom_call.1} parent=1 // pred_check_branch
      %100 = sbr.rel (0) target = $region57
    $region56: #{tpu_custom_call.1} parent=1 // pred_region
      _
    $region57: #{tpu_custom_call.1} parent=1 // pred_fallthru
      _
    // Predicated region
    $region58: #{tpu_custom_call.1} parent=1 // pred_check
      _
    $region59: #{tpu_custom_call.1} parent=1 // pred_check_branch
      %102 = sbr.rel (0) target = $region61
    $region60: #{tpu_custom_call.1} parent=1 // pred_region
      _
    $region61: #{tpu_custom_call.1} parent=1 // pred_fallthru
      _
    // Predicated region
    $region62: #{tpu_custom_call.1} parent=1 // pred_check
      _
    $region63: #{tpu_custom_call.1} parent=1 // pred_check_branch
      %104 = sbr.rel (0) target = $region65
    $region64: #{tpu_custom_call.1} parent=1 // pred_region
      _
    $region65: #{tpu_custom_call.1} parent=1 // pred_fallthru
      _
    // Predicated region
    $region66: #{tpu_custom_call.1} parent=1 // pred_check
      _
    $region67: #{tpu_custom_call.1} parent=1 // pred_check_branch
      %106 = sbr.rel (0) target = $region69
    $region68: #{tpu_custom_call.1} parent=1 // pred_region
      _
    $region69: #{tpu_custom_call.1} parent=1 // pred_fallthru
      _
    // Predicated region
    $region70: #{tpu_custom_call.1} parent=1 // pred_check
      _
    $region71: #{tpu_custom_call.1} parent=1 // pred_check_branch
      %108 = sbr.rel (0) target = $region73
    $region72: #{tpu_custom_call.1} parent=1 // pred_region
      _
    $region73: #{tpu_custom_call.1} parent=1 // pred_fallthru
      _
    // Predicated region
    $region74: #{tpu_custom_call.1} parent=1 // pred_check
      _
    $region75: #{tpu_custom_call.1} parent=1 // pred_check_branch
      %110 = sbr.rel (0) target = $region77
    $region76: #{tpu_custom_call.1} parent=1 // pred_region
      _
    $region77: #{tpu_custom_call.1} parent=1 // pred_fallthru
      _
    // Predicated region
    $region78: #{tpu_custom_call.1} parent=1 // pred_check
      _
    $region79: #{tpu_custom_call.1} parent=1 // pred_check_branch
      %112 = sbr.rel (0) target = $region81
    $region80: #{tpu_custom_call.1} parent=1 // pred_region
      _
    $region81: #{tpu_custom_call.1} parent=1 // pred_fallthru
      _
    // Predicated region
    $region82: #{tpu_custom_call.1} parent=1 // pred_check
      _
    $region83: #{tpu_custom_call.1} parent=1 // pred_check_branch
      %114 = sbr.rel (0) target = $region85
    $region84: #{tpu_custom_call.1} parent=1 // pred_region
      _
    $region85: #{tpu_custom_call.1} parent=1 // pred_fallthru
      _
    // Predicated region
    $region86: #{tpu_custom_call.1} parent=1 // pred_check
      _
    $region87: #{tpu_custom_call.1} parent=1 // pred_check_branch
      %116 = sbr.rel (0) target = $region89
    $region88: #{tpu_custom_call.1} parent=1 // pred_region
      _
    $region89: #{tpu_custom_call.1} parent=1 // pred_fallthru
      _
    // Predicated region
    $region90: #{tpu_custom_call.1} parent=1 // pred_check
      _
    $region91: #{tpu_custom_call.1} parent=1 // pred_check_branch
      %118 = sbr.rel (0) target = $region93
    $region92: #{tpu_custom_call.1} parent=1 // pred_region
      _
    $region93: #{tpu_custom_call.1} parent=1 // pred_fallthru
      _
    // Predicated region
    $region94: #{tpu_custom_call.1} parent=1 // pred_check
      _
    $region95: #{tpu_custom_call.1} parent=1 // pred_check_branch
      %120 = sbr.rel (0) target = $region97
    $region96: #{tpu_custom_call.1} parent=1 // pred_region
      _
    $region97: #{tpu_custom_call.1} parent=1 // pred_fallthru
      _
    // Predicated region
    $region98: #{tpu_custom_call.1} parent=1 // pred_check
      _
    $region99: #{tpu_custom_call.1} parent=1 // pred_check_branch
      %122 = sbr.rel (0) target = $region101
    $region100: #{tpu_custom_call.1} parent=1 // pred_region
      _
    $region101: #{tpu_custom_call.1} parent=1 // pred_fallthru
      _
    // Predicated region
    $region102: #{tpu_custom_call.1} parent=1 // pred_check
      _
    $region103: #{tpu_custom_call.1} parent=1 // pred_check_branch
      %124 = sbr.rel (0) target = $region105
    $region104: #{tpu_custom_call.1} parent=1 // pred_region
      _
    $region105: #{tpu_custom_call.1} parent=1 // pred_fallthru
      _
    // Predicated region
    $region106: #{tpu_custom_call.1} parent=1 // pred_check
      _
    $region107: #{tpu_custom_call.1} parent=1 // pred_check_branch
      %126 = sbr.rel (0) target = $region109
    $region108: #{tpu_custom_call.1} parent=1 // pred_region
      _
    $region109: #{tpu_custom_call.1} parent=1 // pred_fallthru
      _
    // Predicated region
    $region110: #{tpu_custom_call.1} parent=1 // pred_check
      _
    $region111: #{tpu_custom_call.1} parent=1 // pred_check_branch
      %128 = sbr.rel (0) target = $region113
    $region112: #{tpu_custom_call.1} parent=1 // pred_region
      _
    $region113: #{tpu_custom_call.1} parent=1 // pred_fallthru
      _
    // Predicated region
    $region114: #{tpu_custom_call.1} parent=1 // pred_check
      _
    $region115: #{tpu_custom_call.1} parent=1 // pred_check_branch
      %130 = sbr.rel (0) target = $region117
    $region116: #{tpu_custom_call.1} parent=1 // pred_region
      _
    $region117: #{tpu_custom_call.1} parent=1 // pred_fallthru
      _
    // Predicated region
    $region118: #{tpu_custom_call.1} parent=1 // pred_check
      _
    $region119: #{tpu_custom_call.1} parent=1 // pred_check_branch
      %132 = sbr.rel (0) target = $region121
    $region120: #{tpu_custom_call.1} parent=1 // pred_region
      _
    $region121: #{tpu_custom_call.1} parent=1 // pred_fallthru
      _
    // Predicated region
    $region122: #{tpu_custom_call.1} parent=1 // pred_check
      _
    $region123: #{tpu_custom_call.1} parent=1 // pred_check_branch
      %134 = sbr.rel (0) target = $region125
    $region124: #{tpu_custom_call.1} parent=1 // pred_region
      _
    $region125: #{tpu_custom_call.1} parent=1 // pred_fallthru
      _
    // Predicated region
    $region126: #{tpu_custom_call.1} parent=1 // pred_check
      _
    $region127: #{tpu_custom_call.1} parent=1 // pred_check_branch
      %136 = sbr.rel (0) target = $region129
    $region128: #{tpu_custom_call.1} parent=1 // pred_region
      _
    $region129: #{tpu_custom_call.1} parent=1 // pred_fallthru
      _
    %v137 = vld [vmem:[%s1] sm:$0xff]
    %v138 = vld [vmem:[%s1 + $0x8] sm:$0xff]
    %v139 = vld [vmem:[%s1 + $0x10] sm:$0x1f]
    %v140 = vld [vmem:[%s3] sm:$0xff]
    %v141 = vld [vmem:[%s3 + $0x8] sm:$0xff]
    %v142 = vld [vmem:[%s3 + $0x10] sm:$0x1f]
    %v143 = vld [vmem:[%s9] sm:$0xff]
    %v144 = vld [vmem:[%s11] sm:$0x1]
    %v145 = vld [vmem:[%s13] sm:$0xff]
    %v146 = vld [vmem:[%s13 + $0x8] sm:$0xff]
    %v147 = vld [vmem:[%s13 + $0x10] sm:$0xff]
    %v148 = vld [vmem:[%s13 + $0x18] sm:$0xff]
    %v149 = vld [vmem:[%s15] sm:$0x1]
    %v150 = vld [vmem:[%s17] sm:$0xff]
    %v151 = vld [vmem:[%s17 + $0x8] sm:$0xff]
    %v152 = vld [vmem:[%s17 + $0x10] sm:$0xff]
    %v153 = vld [vmem:[%s19] sm:$0x1]
    %vm154 = vcmask 171008
    %v156 = vsel %vm154, %v137, 0
    %v159 = vsel %vm154, %v138, 0
    %v162 = vsel %vm154, %v139, 0
    %vm164 = vcmask 1044480
    %v166 = vsel %vm164, %v142, 0
    %168 = vmatpush.msra.mxu0 0.0
    %169 = vmatpush.msra.mxu0 0.0
    %170 = vmatpush.msra.mxu0 0.0
    %171 = vmatpush.msra.mxu0 0.0
    %172 = vmatpush.msra.mxu0 0.0
    %173 = vmatpush.msra.mxu0 0.0
    %174 = vmatpush.msra.mxu0 0.0
    %175 = vmatpush.msra.mxu0 0.0
    %176 = vmatpush.msra.mxu0 0.0
    %177 = vmatpush.msra.mxu0 0.0
    %178 = vmatpush.msra.mxu0 0.0
    %179 = vmatpush.msra.mxu0 0.0
    %180 = vmatpush.msra.mxu0 0.0
    %181 = vmatpush.msra.mxu0 %v166
    %182 = vmatpush.msra.mxu0 %v141
    %183 = vmatpush.msra.mxu0 %v140
    %184 = vmatmul.f32.gmra.mxu0 %v156
    %v185 = vpop.f32.mrf.mxu0
    %v186 = vadd.f32 0.0, %v185
    %187 = vmatmul.f32.gmra.mxu0 %v159
    %v188 = vpop.f32.mrf.mxu0
    %v189 = vadd.f32 0.0, %v188
    %190 = vmatmul.f32.gmra.mxu0 %v162
    %v191 = vpop.f32.mrf.mxu0
    %v192 = vadd.f32 0.0, %v191
    %193 = vdwg.mxu0
    %v195 = vperm.slane %v144, 0
    %vm197 = vcmask 64512
    %v199 = vsel %vm197, %v186, 0
    %v202 = vsel %vm197, %v189, 0
    %v205 = vsel %vm197, %v192, 0
    %207 = vmatpush.msra.mxu0 0.0
    %208 = vmatpush.msra.mxu0 0.0
    %209 = vmatpush.msra.mxu0 0.0
    %210 = vmatpush.msra.mxu0 0.0
    %211 = vmatpush.msra.mxu0 0.0
    %212 = vmatpush.msra.mxu0 0.0
    %213 = vmatpush.msra.mxu0 0.0
    %214 = vmatpush.msra.mxu0 0.0
    %215 = vmatpush.msra.mxu0 0.0
    %216 = vmatpush.msra.mxu0 0.0
    %217 = vmatpush.msra.mxu0 0.0
    %218 = vmatpush.msra.mxu0 0.0
    %219 = vmatpush.msra.mxu0 0.0
    %220 = vmatpush.msra.mxu0 0.0
    %221 = vmatpush.msra.mxu0 0.0
    %222 = vmatpush.msra.mxu0 %v143
    %223 = vmatmul.f32.gmra.mxu0 %v199
    %v224 = vpop.f32.mrf.mxu0
    %v225 = vadd.f32 %v195, %v224
    %226 = vmatmul.f32.gmra.mxu0 %v202
    %v227 = vpop.f32.mrf.mxu0
    %v228 = vadd.f32 %v195, %v227
    %229 = vmatmul.f32.gmra.mxu0 %v205
    %v230 = vpop.f32.mrf.mxu0
    %v231 = vadd.f32 %v195, %v230
    %232 = vdwg.mxu0
    %v233 = vmax.f32 %v225, 0.0
    %v234 = vmax.f32 %v228, 0.0
    %v235 = vmax.f32 %v231, 0.0
    %v237 = vsel %vm164, %v235, 0
    %239 = vmatpush.msra.mxu0 0.0
    %240 = vmatpush.msra.mxu0 0.0
    %241 = vmatpush.msra.mxu0 0.0
    %242 = vmatpush.msra.mxu0 0.0
    %243 = vmatpush.msra.mxu0 0.0
    %244 = vmatpush.msra.mxu0 0.0
    %245 = vmatpush.msra.mxu0 0.0
    %246 = vmatpush.msra.mxu0 0.0
    %247 = vmatpush.msra.mxu0 0.0
    %248 = vmatpush.msra.mxu0 0.0
    %249 = vmatpush.msra.mxu0 0.0
    %250 = vmatpush.msra.mxu0 0.0
    %251 = vmatpush.msra.mxu0 0.0
    %252 = vmatpush.msra.mxu0 %v237
    %253 = vmatpush.msra.mxu0 %v234
    %254 = vmatpush.msra.mxu0 %v233
    %255 = vmatmul.f32.gmra.mxu0 %v156
    %v256 = vpop.f32.mrf.mxu0
    %v257 = vadd.f32 0.0, %v256
    %258 = vmatmul.f32.gmra.mxu0 %v159
    %v259 = vpop.f32.mrf.mxu0
    %v260 = vadd.f32 0.0, %v259
    %261 = vmatmul.f32.gmra.mxu0 %v162
    %v262 = vpop.f32.mrf.mxu0
    %v263 = vadd.f32 0.0, %v262
    %264 = vdwg.mxu0
    %v266 = vperm.slane %v149, 0
    %vm268 = vcmask 261120
    %v270 = vsel %vm268, %v257, 0
    %v273 = vsel %vm268, %v260, 0
    %v276 = vsel %vm268, %v263, 0
    %278 = vmatpush.msra.mxu0 0.0
    %279 = vmatpush.msra.mxu0 0.0
    %280 = vmatpush.msra.mxu0 0.0
    %281 = vmatpush.msra.mxu0 0.0
    %282 = vmatpush.msra.mxu0 0.0
    %283 = vmatpush.msra.mxu0 0.0
    %284 = vmatpush.msra.mxu0 0.0
    %285 = vmatpush.msra.mxu0 0.0
    %286 = vmatpush.msra.mxu0 0.0
    %287 = vmatpush.msra.mxu0 0.0
    %288 = vmatpush.msra.mxu0 0.0
    %289 = vmatpush.msra.mxu0 0.0
    %290 = vmatpush.msra.mxu0 %v148
    %291 = vmatpush.msra.mxu0 %v147
    %292 = vmatpush.msra.mxu0 %v146
    %293 = vmatpush.msra.mxu0 %v145
    %294 = vmatmul.f32.gmra.mxu0 %v270
    %v295 = vpop.f32.mrf.mxu0
    %v296 = vadd.f32 %v266, %v295
    %297 = vmatmul.f32.gmra.mxu0 %v273
    %v298 = vpop.f32.mrf.mxu0
    %v299 = vadd.f32 %v266, %v298
    %300 = vmatmul.f32.gmra.mxu0 %v276
    %v301 = vpop.f32.mrf.mxu0
    %v302 = vadd.f32 %v266, %v301
    %303 = vdwg.mxu0
    %v304 = vmax.f32 %v296, 0.0
    %v305 = vmax.f32 %v299, 0.0
    %v306 = vmax.f32 %v302, 0.0
    %v308 = vsel %vm164, %v306, 0
    %310 = vmatpush.msra.mxu0 0.0
    %311 = vmatpush.msra.mxu0 0.0
    %312 = vmatpush.msra.mxu0 0.0
    %313 = vmatpush.msra.mxu0 0.0
    %314 = vmatpush.msra.mxu0 0.0
    %315 = vmatpush.msra.mxu0 0.0
    %316 = vmatpush.msra.mxu0 0.0
    %317 = vmatpush.msra.mxu0 0.0
    %318 = vmatpush.msra.mxu0 0.0
    %319 = vmatpush.msra.mxu0 0.0
    %320 = vmatpush.msra.mxu0 0.0
    %321 = vmatpush.msra.mxu0 0.0
    %322 = vmatpush.msra.mxu0 0.0
    %323 = vmatpush.msra.mxu0 %v308
    %324 = vmatpush.msra.mxu0 %v305
    %325 = vmatpush.msra.mxu0 %v304
    %326 = vmatmul.f32.gmra.mxu0 %v156
    %v327 = vpop.f32.mrf.mxu0
    %v328 = vadd.f32 0.0, %v327
    %329 = vmatmul.f32.gmra.mxu0 %v159
    %v330 = vpop.f32.mrf.mxu0
    %v331 = vadd.f32 0.0, %v330
    %332 = vmatmul.f32.gmra.mxu0 %v162
    %v333 = vpop.f32.mrf.mxu0
    %v334 = vadd.f32 0.0, %v333
    %335 = vdwg.mxu0
    %v337 = vperm.slane %v153, 0
    %vm339 = vcmask 195584
    %v341 = vsel %vm339, %v328, 0
    %v344 = vsel %vm339, %v331, 0
    %v347 = vsel %vm339, %v334, 0
    %349 = vmatpush.msra.mxu0 0.0
    %350 = vmatpush.msra.mxu0 0.0
    %351 = vmatpush.msra.mxu0 0.0
    %352 = vmatpush.msra.mxu0 0.0
    %353 = vmatpush.msra.mxu0 0.0
    %354 = vmatpush.msra.mxu0 0.0
    %355 = vmatpush.msra.mxu0 0.0
    %356 = vmatpush.msra.mxu0 0.0
    %357 = vmatpush.msra.mxu0 0.0
    %358 = vmatpush.msra.mxu0 0.0
    %359 = vmatpush.msra.mxu0 0.0
    %360 = vmatpush.msra.mxu0 0.0
    %361 = vmatpush.msra.mxu0 0.0
    %362 = vmatpush.msra.mxu0 %v152
    %363 = vmatpush.msra.mxu0 %v151
    %364 = vmatpush.msra.mxu0 %v150
    %365 = vmatmul.f32.gmra.mxu0 %v341
    %v366 = vpop.f32.mrf.mxu0
    %v367 = vadd.f32 %v337, %v366
    %368 = vmatmul.f32.gmra.mxu0 %v344
    %v369 = vpop.f32.mrf.mxu0
    %v370 = vadd.f32 %v337, %v369
    %371 = vmatmul.f32.gmra.mxu0 %v347
    %v372 = vpop.f32.mrf.mxu0
    %v373 = vadd.f32 %v337, %v372
    %374 = vdwg.mxu0
    %v375 = vld [vmem:[%s5] sm:$0xff]
    %v376 = vld [vmem:[%s5 + $0x8] sm:$0xff]
    %v377 = vld [vmem:[%s5 + $0x10] sm:$0xff]
    %v378 = vld [vmem:[%s5 + $0x18] sm:$0xff]
    %v379 = vld [vmem:[%s5 + $0x20] sm:$0xff]
    %v380 = vld [vmem:[%s5 + $0x28] sm:$0xff]
    %v381 = vld [vmem:[%s5 + $0x30] sm:$0xff]
    %v382 = vld [vmem:[%s5 + $0x38] sm:$0xf]
    %v383 = vld [vmem:[%s7] sm:$0xff]
    %v384 = vld [vmem:[%s7 + $0x8] sm:$0xff]
    %v385 = vld [vmem:[%s7 + $0x10] sm:$0xff]
    %v386 = vld [vmem:[%s7 + $0x18] sm:$0xff]
    %v387 = vld [vmem:[%s7 + $0x20] sm:$0xff]
    %v388 = vld [vmem:[%s7 + $0x28] sm:$0xff]
    %v389 = vld [vmem:[%s7 + $0x30] sm:$0xff]
    %v390 = vld [vmem:[%s7 + $0x38] sm:$0xf]
    %v391 = vld [vmem:[%s21] sm:$0xf]
    %v392 = vld [vmem:[%s23] sm:$0x1]
    %v393 = vld [vmem:[%s25] sm:$0xff]
    %v394 = vld [vmem:[%s25 + $0x8] sm:$0xff]
    %v395 = vld [vmem:[%s25 + $0x10] sm:$0xff]
    %v396 = vld [vmem:[%s25 + $0x18] sm:$0xff]
    %v397 = vld [vmem:[%s27] sm:$0x1]
    %v398 = vld [vmem:[%s29] sm:$0xff]
    %v399 = vld [vmem:[%s29 + $0x8] sm:$0xff]
    %v400 = vld [vmem:[%s29 + $0x10] sm:$0xff]
    %v401 = vld [vmem:[%s31] sm:$0x1]
    %vm402 = vcmask 490496
    %v404 = vsel %vm402, %v375, 0
    %v407 = vsel %vm402, %v376, 0
    %v410 = vsel %vm402, %v377, 0
    %v413 = vsel %vm402, %v378, 0
    %v416 = vsel %vm402, %v379, 0
    %v419 = vsel %vm402, %v380, 0
    %v422 = vsel %vm402, %v381, 0
    %v425 = vsel %vm402, %v382, 0
    %vm427 = vcmask 1043456
    %v429 = vsel %vm427, %v390, 0
    %431 = vmatpush.msra.mxu0 0.0
    %432 = vmatpush.msra.mxu0 0.0
    %433 = vmatpush.msra.mxu0 0.0
    %434 = vmatpush.msra.mxu0 0.0
    %435 = vmatpush.msra.mxu0 0.0
    %436 = vmatpush.msra.mxu0 0.0
    %437 = vmatpush.msra.mxu0 0.0
    %438 = vmatpush.msra.mxu0 0.0
    %439 = vmatpush.msra.mxu0 %v429
    %440 = vmatpush.msra.mxu0 %v389
    %441 = vmatpush.msra.mxu0 %v388
    %442 = vmatpush.msra.mxu0 %v387
    %443 = vmatpush.msra.mxu0 %v386
    %444 = vmatpush.msra.mxu0 %v385
    %445 = vmatpush.msra.mxu0 %v384
    %446 = vmatpush.msra.mxu0 %v383
    %447 = vmatmul.f32.gmra.mxu0 %v404
    %v448 = vpop.f32.mrf.mxu0
    %v449 = vadd.f32 0.0, %v448
    %450 = vmatmul.f32.gmra.mxu0 %v407
    %v451 = vpop.f32.mrf.mxu0
    %v452 = vadd.f32 0.0, %v451
    %453 = vmatmul.f32.gmra.mxu0 %v410
    %v454 = vpop.f32.mrf.mxu0
    %v455 = vadd.f32 0.0, %v454
    %456 = vmatmul.f32.gmra.mxu0 %v413
    %v457 = vpop.f32.mrf.mxu0
    %v458 = vadd.f32 0.0, %v457
    %459 = vmatmul.f32.gmra.mxu0 %v416
    %v460 = vpop.f32.mrf.mxu0
    %v461 = vadd.f32 0.0, %v460
    %462 = vmatmul.f32.gmra.mxu0 %v419
    %v463 = vpop.f32.mrf.mxu0
    %v464 = vadd.f32 0.0, %v463
    %465 = vmatmul.f32.gmra.mxu0 %v422
    %v466 = vpop.f32.mrf.mxu0
    %v467 = vadd.f32 0.0, %v466
    %468 = vmatmul.f32.gmra.mxu0 %v425
    %v469 = vpop.f32.mrf.mxu0
    %v470 = vadd.f32 0.0, %v469
    %471 = vdwg.mxu0
    %v473 = vperm.slane %v392, 0
    %vm475 = vcmask 31744
    %v477 = vsel %vm475, %v449, 0
    %v480 = vsel %vm475, %v452, 0
    %v483 = vsel %vm475, %v455, 0
    %v486 = vsel %vm475, %v458, 0
    %v489 = vsel %vm475, %v461, 0
    %v492 = vsel %vm475, %v464, 0
    %v495 = vsel %vm475, %v467, 0
    %v498 = vsel %vm475, %v470, 0
    %v501 = vsel %vm427, %v391, 0
    %503 = vmatpush.msra.mxu0 0.0
    %504 = vmatpush.msra.mxu0 0.0
    %505 = vmatpush.msra.mxu0 0.0
    %506 = vmatpush.msra.mxu0 0.0
    %507 = vmatpush.msra.mxu0 0.0
    %508 = vmatpush.msra.mxu0 0.0
    %509 = vmatpush.msra.mxu0 0.0
    %510 = vmatpush.msra.mxu0 0.0
    %511 = vmatpush.msra.mxu0 0.0
    %512 = vmatpush.msra.mxu0 0.0
    %513 = vmatpush.msra.mxu0 0.0
    %514 = vmatpush.msra.mxu0 0.0
    %515 = vmatpush.msra.mxu0 0.0
    %516 = vmatpush.msra.mxu0 0.0
    %517 = vmatpush.msra.mxu0 0.0
    %518 = vmatpush.msra.mxu0 %v501
    %519 = vmatmul.f32.gmra.mxu0 %v477
    %v520 = vpop.f32.mrf.mxu0
    %v521 = vadd.f32 %v473, %v520
    %522 = vmatmul.f32.gmra.mxu0 %v480
    %v523 = vpop.f32.mrf.mxu0
    %v524 = vadd.f32 %v473, %v523
    %525 = vmatmul.f32.gmra.mxu0 %v483
    %v526 = vpop.f32.mrf.mxu0
    %v527 = vadd.f32 %v473, %v526
    %528 = vmatmul.f32.gmra.mxu0 %v486
    %v529 = vpop.f32.mrf.mxu0
    %v530 = vadd.f32 %v473, %v529
    %531 = vmatmul.f32.gmra.mxu0 %v489
    %v532 = vpop.f32.mrf.mxu0
    %v533 = vadd.f32 %v473, %v532
    %534 = vmatmul.f32.gmra.mxu0 %v492
    %v535 = vpop.f32.mrf.mxu0
    %v536 = vadd.f32 %v473, %v535
    %537 = vmatmul.f32.gmra.mxu0 %v495
    %v538 = vpop.f32.mrf.mxu0
    %v539 = vadd.f32 %v473, %v538
    %540 = vmatmul.f32.gmra.mxu0 %v498
    %v541 = vpop.f32.mrf.mxu0
    %v542 = vadd.f32 %v473, %v541
    %543 = vdwg.mxu0
    %v544 = vmax.f32 %v521, 0.0
    %v545 = vmax.f32 %v524, 0.0
    %v546 = vmax.f32 %v527, 0.0
    %v547 = vmax.f32 %v530, 0.0
    %v548 = vmax.f32 %v533, 0.0
    %v549 = vmax.f32 %v536, 0.0
    %v550 = vmax.f32 %v539, 0.0
    %v551 = vmax.f32 %v542, 0.0
    %v553 = vsel %vm427, %v551, 0
    %555 = vmatpush.msra.mxu0 0.0
    %556 = vmatpush.msra.mxu0 0.0
    %557 = vmatpush.msra.mxu0 0.0
    %558 = vmatpush.msra.mxu0 0.0
    %559 = vmatpush.msra.mxu0 0.0
    %560 = vmatpush.msra.mxu0 0.0
    %561 = vmatpush.msra.mxu0 0.0
    %562 = vmatpush.msra.mxu0 0.0
    %563 = vmatpush.msra.mxu0 %v553
    %564 = vmatpush.msra.mxu0 %v550
    %565 = vmatpush.msra.mxu0 %v549
    %566 = vmatpush.msra.mxu0 %v548
    %567 = vmatpush.msra.mxu0 %v547
    %568 = vmatpush.msra.mxu0 %v546
    %569 = vmatpush.msra.mxu0 %v545
    %570 = vmatpush.msra.mxu0 %v544
    %571 = vmatmul.f32.gmra.mxu0 %v404
    %v572 = vpop.f32.mrf.mxu0
    %v573 = vadd.f32 0.0, %v572
    %574 = vmatmul.f32.gmra.mxu0 %v407
    %v575 = vpop.f32.mrf.mxu0
    %v576 = vadd.f32 0.0, %v575
    %577 = vmatmul.f32.gmra.mxu0 %v410
    %v578 = vpop.f32.mrf.mxu0
    %v579 = vadd.f32 0.0, %v578
    %580 = vmatmul.f32.gmra.mxu0 %v413
    %v581 = vpop.f32.mrf.mxu0
    %v582 = vadd.f32 0.0, %v581
    %583 = vmatmul.f32.gmra.mxu0 %v416
    %v584 = vpop.f32.mrf.mxu0
    %v585 = vadd.f32 0.0, %v584
    %586 = vmatmul.f32.gmra.mxu0 %v419
    %v587 = vpop.f32.mrf.mxu0
    %v588 = vadd.f32 0.0, %v587
    %589 = vmatmul.f32.gmra.mxu0 %v422
    %v590 = vpop.f32.mrf.mxu0
    %v591 = vadd.f32 0.0, %v590
    %592 = vmatmul.f32.gmra.mxu0 %v425
    %v593 = vpop.f32.mrf.mxu0
    %v594 = vadd.f32 0.0, %v593
    %595 = vdwg.mxu0
    %v597 = vperm.slane %v397, 0
    %v600 = vsel %vm268, %v573, 0
    %v603 = vsel %vm268, %v576, 0
    %v606 = vsel %vm268, %v579, 0
    %v609 = vsel %vm268, %v582, 0
    %v612 = vsel %vm268, %v585, 0
    %v615 = vsel %vm268, %v588, 0
    %v618 = vsel %vm268, %v591, 0
    %v621 = vsel %vm268, %v594, 0
    %623 = vmatpush.msra.mxu0 0.0
    %624 = vmatpush.msra.mxu0 0.0
    %625 = vmatpush.msra.mxu0 0.0
    %626 = vmatpush.msra.mxu0 0.0
    %627 = vmatpush.msra.mxu0 0.0
    %628 = vmatpush.msra.mxu0 0.0
    %629 = vmatpush.msra.mxu0 0.0
    %630 = vmatpush.msra.mxu0 0.0
    %631 = vmatpush.msra.mxu0 0.0
    %632 = vmatpush.msra.mxu0 0.0
    %633 = vmatpush.msra.mxu0 0.0
    %634 = vmatpush.msra.mxu0 0.0
    %635 = vmatpush.msra.mxu0 %v396
    %636 = vmatpush.msra.mxu0 %v395
    %637 = vmatpush.msra.mxu0 %v394
    %638 = vmatpush.msra.mxu0 %v393
    %639 = vmatmul.f32.gmra.mxu0 %v600
    %v640 = vpop.f32.mrf.mxu0
    %v641 = vadd.f32 %v597, %v640
    %642 = vmatmul.f32.gmra.mxu0 %v603
    %v643 = vpop.f32.mrf.mxu0
    %v644 = vadd.f32 %v597, %v643
    %645 = vmatmul.f32.gmra.mxu0 %v606
    %v646 = vpop.f32.mrf.mxu0
    %v647 = vadd.f32 %v597, %v646
    %648 = vmatmul.f32.gmra.mxu0 %v609
    %v649 = vpop.f32.mrf.mxu0
    %v650 = vadd.f32 %v597, %v649
    %651 = vmatmul.f32.gmra.mxu0 %v612
    %v652 = vpop.f32.mrf.mxu0
    %v653 = vadd.f32 %v597, %v652
    %654 = vmatmul.f32.gmra.mxu0 %v615
    %v655 = vpop.f32.mrf.mxu0
    %v656 = vadd.f32 %v597, %v655
    %657 = vmatmul.f32.gmra.mxu0 %v618
    %v658 = vpop.f32.mrf.mxu0
    %v659 = vadd.f32 %v597, %v658
    %660 = vmatmul.f32.gmra.mxu0 %v621
    %v661 = vpop.f32.mrf.mxu0
    %v662 = vadd.f32 %v597, %v661
    %663 = vdwg.mxu0
    %v664 = vmax.f32 %v641, 0.0
    %v665 = vmax.f32 %v644, 0.0
    %v666 = vmax.f32 %v647, 0.0
    %v667 = vmax.f32 %v650, 0.0
    %v668 = vmax.f32 %v653, 0.0
    %v669 = vmax.f32 %v656, 0.0
    %v670 = vmax.f32 %v659, 0.0
    %v671 = vmax.f32 %v662, 0.0
    %v673 = vsel %vm427, %v671, 0
    %675 = vmatpush.msra.mxu0 0.0
    %676 = vmatpush.msra.mxu0 0.0
    %677 = vmatpush.msra.mxu0 0.0
    %678 = vmatpush.msra.mxu0 0.0
    %679 = vmatpush.msra.mxu0 0.0
    %680 = vmatpush.msra.mxu0 0.0
    %681 = vmatpush.msra.mxu0 0.0
    %682 = vmatpush.msra.mxu0 0.0
    %683 = vmatpush.msra.mxu0 %v673
    %684 = vmatpush.msra.mxu0 %v670
    %685 = vmatpush.msra.mxu0 %v669
    %686 = vmatpush.msra.mxu0 %v668
    %687 = vmatpush.msra.mxu0 %v667
    %688 = vmatpush.msra.mxu0 %v666
    %689 = vmatpush.msra.mxu0 %v665
    %690 = vmatpush.msra.mxu0 %v664
    %691 = vmatmul.f32.gmra.mxu0 %v404
    %v692 = vpop.f32.mrf.mxu0
    %v693 = vadd.f32 0.0, %v692
    %694 = vmatmul.f32.gmra.mxu0 %v407
    %v695 = vpop.f32.mrf.mxu0
    %v696 = vadd.f32 0.0, %v695
    %697 = vmatmul.f32.gmra.mxu0 %v410
    %v698 = vpop.f32.mrf.mxu0
    %v699 = vadd.f32 0.0, %v698
    %700 = vmatmul.f32.gmra.mxu0 %v413
    %v701 = vpop.f32.mrf.mxu0
    %v702 = vadd.f32 0.0, %v701
    %703 = vmatmul.f32.gmra.mxu0 %v416
    %v704 = vpop.f32.mrf.mxu0
    %v705 = vadd.f32 0.0, %v704
    %706 = vmatmul.f32.gmra.mxu0 %v419
    %v707 = vpop.f32.mrf.mxu0
    %v708 = vadd.f32 0.0, %v707
    %709 = vmatmul.f32.gmra.mxu0 %v422
    %v710 = vpop.f32.mrf.mxu0
    %v711 = vadd.f32 0.0, %v710
    %712 = vmatmul.f32.gmra.mxu0 %v425
    %v713 = vpop.f32.mrf.mxu0
    %v714 = vadd.f32 0.0, %v713
    %715 = vdwg.mxu0
    %v717 = vperm.slane %v401, 0
    %v720 = vsel %vm339, %v693, 0
    %v723 = vsel %vm339, %v696, 0
    %v726 = vsel %vm339, %v699, 0
    %v729 = vsel %vm339, %v702, 0
    %v732 = vsel %vm339, %v705, 0
    %v735 = vsel %vm339, %v708, 0
    %v738 = vsel %vm339, %v711, 0
    %v741 = vsel %vm339, %v714, 0
    %743 = vmatpush.msra.mxu0 0.0
    %744 = vmatpush.msra.mxu0 0.0
    %745 = vmatpush.msra.mxu0 0.0
    %746 = vmatpush.msra.mxu0 0.0
    %747 = vmatpush.msra.mxu0 0.0
    %748 = vmatpush.msra.mxu0 0.0
    %749 = vmatpush.msra.mxu0 0.0
    %750 = vmatpush.msra.mxu0 0.0
    %751 = vmatpush.msra.mxu0 0.0
    %752 = vmatpush.msra.mxu0 0.0
    %753 = vmatpush.msra.mxu0 0.0
    %754 = vmatpush.msra.mxu0 0.0
    %755 = vmatpush.msra.mxu0 0.0
    %756 = vmatpush.msra.mxu0 %v400
    %757 = vmatpush.msra.mxu0 %v399
    %758 = vmatpush.msra.mxu0 %v398
    %759 = vmatmul.f32.gmra.mxu0 %v720
    %v760 = vpop.f32.mrf.mxu0
    %v761 = vadd.f32 %v717, %v760
    %762 = vmatmul.f32.gmra.mxu0 %v723
    %v763 = vpop.f32.mrf.mxu0
    %v764 = vadd.f32 %v717, %v763
    %765 = vmatmul.f32.gmra.mxu0 %v726
    %v766 = vpop.f32.mrf.mxu0
    %v767 = vadd.f32 %v717, %v766
    %768 = vmatmul.f32.gmra.mxu0 %v729
    %v769 = vpop.f32.mrf.mxu0
    %v770 = vadd.f32 %v717, %v769
    %771 = vmatmul.f32.gmra.mxu0 %v732
    %v772 = vpop.f32.mrf.mxu0
    %v773 = vadd.f32 %v717, %v772
    %774 = vmatmul.f32.gmra.mxu0 %v735
    %v775 = vpop.f32.mrf.mxu0
    %v776 = vadd.f32 %v717, %v775
    %777 = vmatmul.f32.gmra.mxu0 %v738
    %v778 = vpop.f32.mrf.mxu0
    %v779 = vadd.f32 %v717, %v778
    %780 = vmatmul.f32.gmra.mxu0 %v741
    %v781 = vpop.f32.mrf.mxu0
    %v782 = vadd.f32 %v717, %v781
    %783 = vdwg.mxu0
    %v784 = vld [vmem:[%s33] sm:$0xff]
    %v785 = vld [vmem:[%s33 + $0x8] sm:$0xff]
    %v786 = vlaneseq
    %v787 = vshrl.u32 %v786, 7
    %v788 = vadd.s32 %v787, 8
    %v789 = vadd.s32 %v787, 16
    %vm790 = vcmp.lt.s32.totalorder %v787, 12
    %vm791 = vcmp.lt.s32.totalorder %v788, 12
    %vm792 = vcmp.lt.s32.totalorder %v789, 12
    %v793 = vsel %vm790, 1, 0
    %v794 = vsel %vm791, 1, 0
    %v795 = vsel %vm792, 1, 0
    %v796 = vcvt.s32.f32 %v793
    %v797 = vcvt.s32.f32 %v794
    %v798 = vcvt.s32.f32 %v795
    %v799 = vsub.f32 1.0, %v796
    %v800 = vsub.f32 1.0, %v797
    %v801 = vsub.f32 1.0, %v798
    %vm802 = vcmask 130048
    %v804 = vsel %vm802, %v367, 0
    %v807 = vsel %vm802, %v370, 0
    %v810 = vsel %vm802, %v373, 0
    %812 = vmatpush.msra.mxu0 0.0
    %813 = vmatpush.msra.mxu0 0.0
    %814 = vmatpush.msra.mxu0 0.0
    %815 = vmatpush.msra.mxu0 0.0
    %816 = vmatpush.msra.mxu0 0.0
    %817 = vmatpush.msra.mxu0 0.0
    %818 = vmatpush.msra.mxu0 0.0
    %819 = vmatpush.msra.mxu0 0.0
    %820 = vmatpush.msra.mxu0 0.0
    %821 = vmatpush.msra.mxu0 0.0
    %822 = vmatpush.msra.mxu0 0.0
    %823 = vmatpush.msra.mxu0 0.0
    %824 = vmatpush.msra.mxu0 0.0
    %825 = vmatpush.msra.mxu0 0.0
    %826 = vmatpush.msra.mxu0 %v785
    %827 = vmatpush.msra.mxu0 %v784
    %828 = vmatmul.f32.gmra.mxu0 %v804
    %v829 = vpop.f32.mrf.mxu0
    %v830 = vadd.f32 0.0, %v829
    %831 = vmatmul.f32.gmra.mxu0 %v807
    %v832 = vpop.f32.mrf.mxu0
    %v833 = vadd.f32 0.0, %v832
    %834 = vmatmul.f32.gmra.mxu0 %v810
    %v835 = vpop.f32.mrf.mxu0
    %v836 = vadd.f32 0.0, %v835
    %837 = vdwg.mxu0
    %v838 = vmul.f32 %v830, %v796
    %v839 = vmul.f32 %v833, %v797
    %v840 = vmul.f32 %v836, %v798
    %v841 = vsel %vm802, %v838, 0.0
    %v842 = vsel %vm802, %v839, 0.0
    %v843 = vadd.f32 %v841, %v842
    %vm844 = vcmask 126976
    %v845 = vsel %vm844, %v840, 0.0
    %v846 = vadd.f32 %v843, %v845
    %v847 = vrot.slane %v846, 4
    %v848 = vadd.f32 %v846, %v847
    %v849 = vrot.slane %v848, 2
    %v850 = vadd.f32 %v848, %v849
    %v851 = vrot.slane %v850, 1
    %v852 = vadd.f32 %v850, %v851
    %v853 = vmul.f32 %v852, 0.083333336
    %v854 = vtanh.pop %v853
    %v855 = vmul.f32 %v830, %v799
    %v856 = vmul.f32 %v833, %v800
    %v857 = vmul.f32 %v836, %v801
    %v858 = vsel %vm802, %v855, 0.0
    %v859 = vsel %vm802, %v856, 0.0
    %v860 = vadd.f32 %v858, %v859
    %v861 = vsel %vm844, %v857, 0.0
    %v862 = vadd.f32 %v860, %v861
    %v863 = vrot.slane %v862, 4
    %v864 = vadd.f32 %v862, %v863
    %v865 = vrot.slane %v864, 2
    %v866 = vadd.f32 %v864, %v865
    %v867 = vrot.slane %v866, 1
    %v868 = vadd.f32 %v866, %v867
    %v869 = vmul.f32 %v868, 0.11111111
    %v870 = vtanh.pop %v869
    %v871 = vmul.f32 %v796, %v854
    %v872 = vmul.f32 %v797, %v854
    %v873 = vmul.f32 %v798, %v854
    %v874 = vmul.f32 %v799, %v870
    %v875 = vmul.f32 %v800, %v870
    %v876 = vmul.f32 %v801, %v870
    %v877 = vadd.f32 %v871, %v874
    %v878 = vadd.f32 %v872, %v875
    %v879 = vadd.f32 %v873, %v876
    %v880 = vmul.f32 %v367, %v877
    %v881 = vmul.f32 %v370, %v878
    %v882 = vmul.f32 %v373, %v879
    %v883 = vsel %vm802, %v880, 0.0
    %884 = vadd.xlane.f32.xlu0 %v883
    %v885 = vpop.xlane.xlu0 %884
    %v886 = vsel %vm802, %v881, 0.0
    %887 = vadd.xlane.f32.xlu0 %v886
    %v888 = vpop.xlane.xlu0 %887
    %v889 = vsel %vm844, %v882, 0.0
    %890 = vadd.xlane.f32.xlu0 %v889
    %v891 = vpop.xlane.xlu0 %890
    %v892 = vxor.u32 %v885, 2147483648
    %v893 = vxor.u32 %v888, 2147483648
    %v894 = vxor.u32 %v891, 2147483648
    %v895 = vmul.f32 %v892, 1.442695
    %v896 = vpow.pop %v895
    %v897 = vmul.f32 %v893, 1.442695
    %v898 = vpow.pop %v897
    %v899 = vmul.f32 %v894, 1.442695
    %v900 = vpow.pop %v899
    %v901 = vadd.f32 %v896, 1.0
    %v902 = vadd.f32 %v898, 1.0
    %v903 = vadd.f32 %v900, 1.0
    %v904 = vrcp.pop %v901
    %v905 = vmul.f32 %v901, %v904
    %v906 = vsub.f32 1.0, %v905
    %v907 = vmul.f32 %v904, %v906
    %v908 = vadd.f32 %v904, %v907
    %vm909 = vweird.f32 %v901
    %vm910 = vweird.f32 %v904
    %vm911 = vmor %vm909, %vm910
    %v912 = vsel %vm911, %v904, %v908
    %v913 = vand.u32 2147483647, %v901
    %vm914 = vcmp.eq.f32.partialorder %v913, 8.507059e+37
    %v915 = vand.u32 %v901, 2147483648
    %v916 = vor.u32 1.1754944e-38, %v915
    %v917 = vsel %vm914, %v916, %v912
    %v918 = vmul.f32 1.0, %v917
    %v919 = vrcp.pop %v902
    %v920 = vmul.f32 %v902, %v919
    %v921 = vsub.f32 1.0, %v920
    %v922 = vmul.f32 %v919, %v921
    %v923 = vadd.f32 %v919, %v922
    %vm924 = vweird.f32 %v902
    %vm925 = vweird.f32 %v919
    %vm926 = vmor %vm924, %vm925
    %v927 = vsel %vm926, %v919, %v923
    %v928 = vand.u32 2147483647, %v902
    %vm929 = vcmp.eq.f32.partialorder %v928, 8.507059e+37
    %v930 = vand.u32 %v902, 2147483648
    %v931 = vor.u32 1.1754944e-38, %v930
    %v932 = vsel %vm929, %v931, %v927
    %v933 = vmul.f32 1.0, %v932
    %v934 = vrcp.pop %v903
    %v935 = vmul.f32 %v903, %v934
    %v936 = vsub.f32 1.0, %v935
    %v937 = vmul.f32 %v934, %v936
    %v938 = vadd.f32 %v934, %v937
    %vm939 = vweird.f32 %v903
    %vm940 = vweird.f32 %v934
    %vm941 = vmor %vm939, %vm940
    %v942 = vsel %vm941, %v934, %v938
    %v943 = vand.u32 2147483647, %v903
    %vm944 = vcmp.eq.f32.partialorder %v943, 8.507059e+37
    %v945 = vand.u32 %v903, 2147483648
    %v946 = vor.u32 1.1754944e-38, %v945
    %v947 = vsel %vm944, %v946, %v942
    %v948 = vmul.f32 1.0, %v947
    %v949 = vmul.f32 %v918, %v367
    %v950 = vmul.f32 %v933, %v370
    %v951 = vmul.f32 %v948, %v373
    %v952 = vmul.f32 %v949, %v796
    %v953 = vmul.f32 %v950, %v797
    %v954 = vmul.f32 %v951, %v798
    %v955 = vsel %vm802, %v952, 0.0
    %v956 = vsel %vm802, %v953, 0.0
    %v957 = vadd.f32 %v955, %v956
    %v958 = vsel %vm844, %v954, 0.0
    %v959 = vadd.f32 %v957, %v958
    %v960 = vrot.slane %v959, 4
    %v961 = vadd.f32 %v959, %v960
    %v962 = vrot.slane %v961, 2
    %v963 = vadd.f32 %v961, %v962
    %v964 = vrot.slane %v963, 1
    %v965 = vadd.f32 %v963, %v964
    %v966 = vmul.f32 %v949, %v799
    %v967 = vmul.f32 %v950, %v800
    %v968 = vmul.f32 %v951, %v801
    %v969 = vsel %vm802, %v966, 0.0
    %v970 = vsel %vm802, %v967, 0.0
    %v971 = vadd.f32 %v969, %v970
    %v972 = vsel %vm844, %v968, 0.0
    %v973 = vadd.f32 %v971, %v972
    %v974 = vrot.slane %v973, 4
    %v975 = vadd.f32 %v973, %v974
    %v976 = vrot.slane %v975, 2
    %v977 = vadd.f32 %v975, %v976
    %v978 = vrot.slane %v977, 1
    %v979 = vadd.f32 %v977, %v978
    %v980 = vld [vmem:[%s35] sm:$0xff]
    %v981 = vld [vmem:[%s35 + $0x8] sm:$0xff]
    %v982 = vadd.s32 %v787, 24
    %v983 = vadd.s32 %v787, 32
    %v984 = vadd.s32 %v787, 40
    %v985 = vadd.s32 %v787, 48
    %v986 = vadd.s32 %v787, 56
    %vm987 = vcmp.lt.s32.totalorder %v787, 36
    %vm988 = vcmp.lt.s32.totalorder %v788, 36
    %vm989 = vcmp.lt.s32.totalorder %v789, 36
    %vm990 = vcmp.lt.s32.totalorder %v982, 36
    %vm991 = vcmp.lt.s32.totalorder %v983, 36
    %vm992 = vcmp.lt.s32.totalorder %v984, 36
    %vm993 = vcmp.lt.s32.totalorder %v985, 36
    %vm994 = vcmp.lt.s32.totalorder %v986, 36
    %v995 = vsel %vm987, 1, 0
    %v996 = vsel %vm988, 1, 0
    %v997 = vsel %vm989, 1, 0
    %v998 = vsel %vm990, 1, 0
    %v999 = vsel %vm991, 1, 0
    %v1000 = vsel %vm992, 1, 0
    %v1001 = vsel %vm993, 1, 0
    %v1002 = vsel %vm994, 1, 0
    %v1003 = vcvt.s32.f32 %v995
    %v1004 = vcvt.s32.f32 %v996
    %v1005 = vcvt.s32.f32 %v997
    %v1006 = vcvt.s32.f32 %v998
    %v1007 = vcvt.s32.f32 %v999
    %v1008 = vcvt.s32.f32 %v1000
    %v1009 = vcvt.s32.f32 %v1001
    %v1010 = vcvt.s32.f32 %v1002
    %v1011 = vsub.f32 1.0, %v1003
    %v1012 = vsub.f32 1.0, %v1004
    %v1013 = vsub.f32 1.0, %v1005
    %v1014 = vsub.f32 1.0, %v1006
    %v1015 = vsub.f32 1.0, %v1007
    %v1016 = vsub.f32 1.0, %v1008
    %v1017 = vsub.f32 1.0, %v1009
    %v1018 = vsub.f32 1.0, %v1010
    %v1020 = vsel %vm802, %v761, 0
    %v1023 = vsel %vm802, %v764, 0
    %v1026 = vsel %vm802, %v767, 0
    %v1029 = vsel %vm802, %v770, 0
    %v1032 = vsel %vm802, %v773, 0
    %v1035 = vsel %vm802, %v776, 0
    %v1038 = vsel %vm802, %v779, 0
    %v1041 = vsel %vm802, %v782, 0
    %1043 = vmatpush.msra.mxu0 0.0
    %1044 = vmatpush.msra.mxu0 0.0
    %1045 = vmatpush.msra.mxu0 0.0
    %1046 = vmatpush.msra.mxu0 0.0
    %1047 = vmatpush.msra.mxu0 0.0
    %1048 = vmatpush.msra.mxu0 0.0
    %1049 = vmatpush.msra.mxu0 0.0
    %1050 = vmatpush.msra.mxu0 0.0
    %1051 = vmatpush.msra.mxu0 0.0
    %1052 = vmatpush.msra.mxu0 0.0
    %1053 = vmatpush.msra.mxu0 0.0
    %1054 = vmatpush.msra.mxu0 0.0
    %1055 = vmatpush.msra.mxu0 0.0
    %1056 = vmatpush.msra.mxu0 0.0
    %1057 = vmatpush.msra.mxu0 %v981
    %1058 = vmatpush.msra.mxu0 %v980
    %1059 = vmatmul.f32.gmra.mxu0 %v1020
    %v1060 = vpop.f32.mrf.mxu0
    %v1061 = vadd.f32 0.0, %v1060
    %1062 = vmatmul.f32.gmra.mxu0 %v1023
    %v1063 = vpop.f32.mrf.mxu0
    %v1064 = vadd.f32 0.0, %v1063
    %1065 = vmatmul.f32.gmra.mxu0 %v1026
    %v1066 = vpop.f32.mrf.mxu0
    %v1067 = vadd.f32 0.0, %v1066
    %1068 = vmatmul.f32.gmra.mxu0 %v1029
    %v1069 = vpop.f32.mrf.mxu0
    %v1070 = vadd.f32 0.0, %v1069
    %1071 = vmatmul.f32.gmra.mxu0 %v1032
    %v1072 = vpop.f32.mrf.mxu0
    %v1073 = vadd.f32 0.0, %v1072
    %1074 = vmatmul.f32.gmra.mxu0 %v1035
    %v1075 = vpop.f32.mrf.mxu0
    %v1076 = vadd.f32 0.0, %v1075
    %1077 = vmatmul.f32.gmra.mxu0 %v1038
    %v1078 = vpop.f32.mrf.mxu0
    %v1079 = vadd.f32 0.0, %v1078
    %1080 = vmatmul.f32.gmra.mxu0 %v1041
    %v1081 = vpop.f32.mrf.mxu0
    %v1082 = vadd.f32 0.0, %v1081
    %1083 = vdwg.mxu0
    %v1084 = vmul.f32 %v1061, %v1003
    %v1085 = vmul.f32 %v1064, %v1004
    %v1086 = vmul.f32 %v1067, %v1005
    %v1087 = vmul.f32 %v1070, %v1006
    %v1088 = vmul.f32 %v1073, %v1007
    %v1089 = vmul.f32 %v1076, %v1008
    %v1090 = vmul.f32 %v1079, %v1009
    %v1091 = vmul.f32 %v1082, %v1010
    %v1092 = vsel %vm802, %v1084, 0.0
    %v1093 = vsel %vm802, %v1085, 0.0
    %v1094 = vadd.f32 %v1092, %v1093
    %v1095 = vsel %vm802, %v1086, 0.0
    %v1096 = vadd.f32 %v1094, %v1095
    %v1097 = vsel %vm802, %v1087, 0.0
    %v1098 = vadd.f32 %v1096, %v1097
    %v1099 = vsel %vm802, %v1088, 0.0
    %v1100 = vadd.f32 %v1098, %v1099
    %v1101 = vsel %vm802, %v1089, 0.0
    %v1102 = vadd.f32 %v1100, %v1101
    %v1103 = vsel %vm802, %v1090, 0.0
    %v1104 = vadd.f32 %v1102, %v1103
    %vm1105 = vcmask 125952
    %v1106 = vsel %vm1105, %v1091, 0.0
    %v1107 = vadd.f32 %v1104, %v1106
    %v1108 = vrot.slane %v1107, 4
    %v1109 = vadd.f32 %v1107, %v1108
    %v1110 = vrot.slane %v1109, 2
    %v1111 = vadd.f32 %v1109, %v1110
    %v1112 = vrot.slane %v1111, 1
    %v1113 = vadd.f32 %v1111, %v1112
    %v1114 = vmul.f32 %v1113, 0.027777778
    %v1115 = vtanh.pop %v1114
    %v1116 = vmul.f32 %v1061, %v1011
    %v1117 = vmul.f32 %v1064, %v1012
    %v1118 = vmul.f32 %v1067, %v1013
    %v1119 = vmul.f32 %v1070, %v1014
    %v1120 = vmul.f32 %v1073, %v1015
    %v1121 = vmul.f32 %v1076, %v1016
    %v1122 = vmul.f32 %v1079, %v1017
    %v1123 = vmul.f32 %v1082, %v1018
    %v1124 = vsel %vm802, %v1116, 0.0
    %v1125 = vsel %vm802, %v1117, 0.0
    %v1126 = vadd.f32 %v1124, %v1125
    %v1127 = vsel %vm802, %v1118, 0.0
    %v1128 = vadd.f32 %v1126, %v1127
    %v1129 = vsel %vm802, %v1119, 0.0
    %v1130 = vadd.f32 %v1128, %v1129
    %v1131 = vsel %vm802, %v1120, 0.0
    %v1132 = vadd.f32 %v1130, %v1131
    %v1133 = vsel %vm802, %v1121, 0.0
    %v1134 = vadd.f32 %v1132, %v1133
    %v1135 = vsel %vm802, %v1122, 0.0
    %v1136 = vadd.f32 %v1134, %v1135
    %v1137 = vsel %vm1105, %v1123, 0.0
    %v1138 = vadd.f32 %v1136, %v1137
    %v1139 = vrot.slane %v1138, 4
    %v1140 = vadd.f32 %v1138, %v1139
    %v1141 = vrot.slane %v1140, 2
    %v1142 = vadd.f32 %v1140, %v1141
    %v1143 = vrot.slane %v1142, 1
    %v1144 = vadd.f32 %v1142, %v1143
    %v1145 = vmul.f32 %v1144, 0.041666668
    %v1146 = vtanh.pop %v1145
    %v1147 = vmul.f32 %v1003, %v1115
    %v1148 = vmul.f32 %v1004, %v1115
    %v1149 = vmul.f32 %v1005, %v1115
    %v1150 = vmul.f32 %v1006, %v1115
    %v1151 = vmul.f32 %v1007, %v1115
    %v1152 = vmul.f32 %v1008, %v1115
    %v1153 = vmul.f32 %v1009, %v1115
    %v1154 = vmul.f32 %v1010, %v1115
    %v1155 = vmul.f32 %v1011, %v1146
    %v1156 = vmul.f32 %v1012, %v1146
    %v1157 = vmul.f32 %v1013, %v1146
    %v1158 = vmul.f32 %v1014, %v1146
    %v1159 = vmul.f32 %v1015, %v1146
    %v1160 = vmul.f32 %v1016, %v1146
    %v1161 = vmul.f32 %v1017, %v1146
    %v1162 = vmul.f32 %v1018, %v1146
    %v1163 = vadd.f32 %v1147, %v1155
    %v1164 = vadd.f32 %v1148, %v1156
    %v1165 = vadd.f32 %v1149, %v1157
    %v1166 = vadd.f32 %v1150, %v1158
    %v1167 = vadd.f32 %v1151, %v1159
    %v1168 = vadd.f32 %v1152, %v1160
    %v1169 = vadd.f32 %v1153, %v1161
    %v1170 = vadd.f32 %v1154, %v1162
    %v1171 = vmul.f32 %v761, %v1163
    %v1172 = vmul.f32 %v764, %v1164
    %v1173 = vmul.f32 %v767, %v1165
    %v1174 = vmul.f32 %v770, %v1166
    %v1175 = vmul.f32 %v773, %v1167
    %v1176 = vmul.f32 %v776, %v1168
    %v1177 = vmul.f32 %v779, %v1169
    %v1178 = vmul.f32 %v782, %v1170
    %v1179 = vsel %vm802, %v1171, 0.0
    %1180 = vadd.xlane.f32.xlu0 %v1179
    %v1181 = vpop.xlane.xlu0 %1180
    %v1182 = vsel %vm802, %v1172, 0.0
    %1183 = vadd.xlane.f32.xlu0 %v1182
    %v1184 = vpop.xlane.xlu0 %1183
    %v1185 = vsel %vm802, %v1173, 0.0
    %1186 = vadd.xlane.f32.xlu0 %v1185
    %v1187 = vpop.xlane.xlu0 %1186
    %v1188 = vsel %vm802, %v1174, 0.0
    %1189 = vadd.xlane.f32.xlu0 %v1188
    %v1190 = vpop.xlane.xlu0 %1189
    %v1191 = vsel %vm802, %v1175, 0.0
    %1192 = vadd.xlane.f32.xlu0 %v1191
    %v1193 = vpop.xlane.xlu0 %1192
    %v1194 = vsel %vm802, %v1176, 0.0
    %1195 = vadd.xlane.f32.xlu0 %v1194
    %v1196 = vpop.xlane.xlu0 %1195
    %v1197 = vsel %vm802, %v1177, 0.0
    %1198 = vadd.xlane.f32.xlu0 %v1197
    %v1199 = vpop.xlane.xlu0 %1198
    %v1200 = vsel %vm1105, %v1178, 0.0
    %1201 = vadd.xlane.f32.xlu0 %v1200
    %v1202 = vpop.xlane.xlu0 %1201
    %v1203 = vxor.u32 %v1181, 2147483648
    %v1204 = vxor.u32 %v1184, 2147483648
    %v1205 = vxor.u32 %v1187, 2147483648
    %v1206 = vxor.u32 %v1190, 2147483648
    %v1207 = vxor.u32 %v1193, 2147483648
    %v1208 = vxor.u32 %v1196, 2147483648
    %v1209 = vxor.u32 %v1199, 2147483648
    %v1210 = vxor.u32 %v1202, 2147483648
    %v1211 = vmul.f32 %v1203, 1.442695
    %v1212 = vpow.pop %v1211
    %v1213 = vmul.f32 %v1204, 1.442695
    %v1214 = vpow.pop %v1213
    %v1215 = vmul.f32 %v1205, 1.442695
    %v1216 = vpow.pop %v1215
    %v1217 = vmul.f32 %v1206, 1.442695
    %v1218 = vpow.pop %v1217
    %v1219 = vmul.f32 %v1207, 1.442695
    %v1220 = vpow.pop %v1219
    %v1221 = vmul.f32 %v1208, 1.442695
    %v1222 = vpow.pop %v1221
    %v1223 = vmul.f32 %v1209, 1.442695
    %v1224 = vpow.pop %v1223
    %v1225 = vmul.f32 %v1210, 1.442695
    %v1226 = vpow.pop %v1225
    %v1227 = vadd.f32 %v1212, 1.0
    %v1228 = vadd.f32 %v1214, 1.0
    %v1229 = vadd.f32 %v1216, 1.0
    %v1230 = vadd.f32 %v1218, 1.0
    %v1231 = vadd.f32 %v1220, 1.0
    %v1232 = vadd.f32 %v1222, 1.0
    %v1233 = vadd.f32 %v1224, 1.0
    %v1234 = vadd.f32 %v1226, 1.0
    %v1235 = vrcp.pop %v1227
    %v1236 = vmul.f32 %v1227, %v1235
    %v1237 = vsub.f32 1.0, %v1236
    %v1238 = vmul.f32 %v1235, %v1237
    %v1239 = vadd.f32 %v1235, %v1238
    %vm1240 = vweird.f32 %v1227
    %vm1241 = vweird.f32 %v1235
    %vm1242 = vmor %vm1240, %vm1241
    %v1243 = vsel %vm1242, %v1235, %v1239
    %v1244 = vand.u32 2147483647, %v1227
    %vm1245 = vcmp.eq.f32.partialorder %v1244, 8.507059e+37
    %v1246 = vand.u32 %v1227, 2147483648
    %v1247 = vor.u32 1.1754944e-38, %v1246
    %v1248 = vsel %vm1245, %v1247, %v1243
    %v1249 = vmul.f32 1.0, %v1248
    %v1250 = vrcp.pop %v1228
    %v1251 = vmul.f32 %v1228, %v1250
    %v1252 = vsub.f32 1.0, %v1251
    %v1253 = vmul.f32 %v1250, %v1252
    %v1254 = vadd.f32 %v1250, %v1253
    %vm1255 = vweird.f32 %v1228
    %vm1256 = vweird.f32 %v1250
    %vm1257 = vmor %vm1255, %vm1256
    %v1258 = vsel %vm1257, %v1250, %v1254
    %v1259 = vand.u32 2147483647, %v1228
    %vm1260 = vcmp.eq.f32.partialorder %v1259, 8.507059e+37
    %v1261 = vand.u32 %v1228, 2147483648
    %v1262 = vor.u32 1.1754944e-38, %v1261
    %v1263 = vsel %vm1260, %v1262, %v1258
    %v1264 = vmul.f32 1.0, %v1263
    %v1265 = vrcp.pop %v1229
    %v1266 = vmul.f32 %v1229, %v1265
    %v1267 = vsub.f32 1.0, %v1266
    %v1268 = vmul.f32 %v1265, %v1267
    %v1269 = vadd.f32 %v1265, %v1268
    %vm1270 = vweird.f32 %v1229
    %vm1271 = vweird.f32 %v1265
    %vm1272 = vmor %vm1270, %vm1271
    %v1273 = vsel %vm1272, %v1265, %v1269
    %v1274 = vand.u32 2147483647, %v1229
    %vm1275 = vcmp.eq.f32.partialorder %v1274, 8.507059e+37
    %v1276 = vand.u32 %v1229, 2147483648
    %v1277 = vor.u32 1.1754944e-38, %v1276
    %v1278 = vsel %vm1275, %v1277, %v1273
    %v1279 = vmul.f32 1.0, %v1278
    %v1280 = vrcp.pop %v1230
    %v1281 = vmul.f32 %v1230, %v1280
    %v1282 = vsub.f32 1.0, %v1281
    %v1283 = vmul.f32 %v1280, %v1282
    %v1284 = vadd.f32 %v1280, %v1283
    %vm1285 = vweird.f32 %v1230
    %vm1286 = vweird.f32 %v1280
    %vm1287 = vmor %vm1285, %vm1286
    %v1288 = vsel %vm1287, %v1280, %v1284
    %v1289 = vand.u32 2147483647, %v1230
    %vm1290 = vcmp.eq.f32.partialorder %v1289, 8.507059e+37
    %v1291 = vand.u32 %v1230, 2147483648
    %v1292 = vor.u32 1.1754944e-38, %v1291
    %v1293 = vsel %vm1290, %v1292, %v1288
    %v1294 = vmul.f32 1.0, %v1293
    %v1295 = vrcp.pop %v1231
    %v1296 = vmul.f32 %v1231, %v1295
    %v1297 = vsub.f32 1.0, %v1296
    %v1298 = vmul.f32 %v1295, %v1297
    %v1299 = vadd.f32 %v1295, %v1298
    %vm1300 = vweird.f32 %v1231
    %vm1301 = vweird.f32 %v1295
    %vm1302 = vmor %vm1300, %vm1301
    %v1303 = vsel %vm1302, %v1295, %v1299
    %v1304 = vand.u32 2147483647, %v1231
    %vm1305 = vcmp.eq.f32.partialorder %v1304, 8.507059e+37
    %v1306 = vand.u32 %v1231, 2147483648
    %v1307 = vor.u32 1.1754944e-38, %v1306
    %v1308 = vsel %vm1305, %v1307, %v1303
    %v1309 = vmul.f32 1.0, %v1308
    %v1310 = vrcp.pop %v1232
    %v1311 = vmul.f32 %v1232, %v1310
    %v1312 = vsub.f32 1.0, %v1311
    %v1313 = vmul.f32 %v1310, %v1312
    %v1314 = vadd.f32 %v1310, %v1313
    %vm1315 = vweird.f32 %v1232
    %vm1316 = vweird.f32 %v1310
    %vm1317 = vmor %vm1315, %vm1316
    %v1318 = vsel %vm1317, %v1310, %v1314
    %v1319 = vand.u32 2147483647, %v1232
    %vm1320 = vcmp.eq.f32.partialorder %v1319, 8.507059e+37
    %v1321 = vand.u32 %v1232, 2147483648
    %v1322 = vor.u32 1.1754944e-38, %v1321
    %v1323 = vsel %vm1320, %v1322, %v1318
    %v1324 = vmul.f32 1.0, %v1323
    %v1325 = vrcp.pop %v1233
    %v1326 = vmul.f32 %v1233, %v1325
    %v1327 = vsub.f32 1.0, %v1326
    %v1328 = vmul.f32 %v1325, %v1327
    %v1329 = vadd.f32 %v1325, %v1328
    %vm1330 = vweird.f32 %v1233
    %vm1331 = vweird.f32 %v1325
    %vm1332 = vmor %vm1330, %vm1331
    %v1333 = vsel %vm1332, %v1325, %v1329
    %v1334 = vand.u32 2147483647, %v1233
    %vm1335 = vcmp.eq.f32.partialorder %v1334, 8.507059e+37
    %v1336 = vand.u32 %v1233, 2147483648
    %v1337 = vor.u32 1.1754944e-38, %v1336
    %v1338 = vsel %vm1335, %v1337, %v1333
    %v1339 = vmul.f32 1.0, %v1338
    %v1340 = vrcp.pop %v1234
    %v1341 = vmul.f32 %v1234, %v1340
    %v1342 = vsub.f32 1.0, %v1341
    %v1343 = vmul.f32 %v1340, %v1342
    %v1344 = vadd.f32 %v1340, %v1343
    %vm1345 = vweird.f32 %v1234
    %vm1346 = vweird.f32 %v1340
    %vm1347 = vmor %vm1345, %vm1346
    %v1348 = vsel %vm1347, %v1340, %v1344
    %v1349 = vand.u32 2147483647, %v1234
    %vm1350 = vcmp.eq.f32.partialorder %v1349, 8.507059e+37
    %v1351 = vand.u32 %v1234, 2147483648
    %v1352 = vor.u32 1.1754944e-38, %v1351
    %v1353 = vsel %vm1350, %v1352, %v1348
    %v1354 = vmul.f32 1.0, %v1353
    %v1355 = vmul.f32 %v1249, %v761
    %v1356 = vmul.f32 %v1264, %v764
    %v1357 = vmul.f32 %v1279, %v767
    %v1358 = vmul.f32 %v1294, %v770
    %v1359 = vmul.f32 %v1309, %v773
    %v1360 = vmul.f32 %v1324, %v776
    %v1361 = vmul.f32 %v1339, %v779
    %v1362 = vmul.f32 %v1354, %v782
    %v1363 = vmul.f32 %v1355, %v1003
    %v1364 = vmul.f32 %v1356, %v1004
    %v1365 = vmul.f32 %v1357, %v1005
    %v1366 = vmul.f32 %v1358, %v1006
    %v1367 = vmul.f32 %v1359, %v1007
    %v1368 = vmul.f32 %v1360, %v1008
    %v1369 = vmul.f32 %v1361, %v1009
    %v1370 = vmul.f32 %v1362, %v1010
    %v1371 = vsel %vm802, %v1363, 0.0
    %v1372 = vsel %vm802, %v1364, 0.0
    %v1373 = vadd.f32 %v1371, %v1372
    %v1374 = vsel %vm802, %v1365, 0.0
    %v1375 = vadd.f32 %v1373, %v1374
    %v1376 = vsel %vm802, %v1366, 0.0
    %v1377 = vadd.f32 %v1375, %v1376
    %v1378 = vsel %vm802, %v1367, 0.0
    %v1379 = vadd.f32 %v1377, %v1378
    %v1380 = vsel %vm802, %v1368, 0.0
    %v1381 = vadd.f32 %v1379, %v1380
    %v1382 = vsel %vm802, %v1369, 0.0
    %v1383 = vadd.f32 %v1381, %v1382
    %v1384 = vsel %vm1105, %v1370, 0.0
    %v1385 = vadd.f32 %v1383, %v1384
    %v1386 = vrot.slane %v1385, 4
    %v1387 = vadd.f32 %v1385, %v1386
    %v1388 = vrot.slane %v1387, 2
    %v1389 = vadd.f32 %v1387, %v1388
    %v1390 = vrot.slane %v1389, 1
    %v1391 = vadd.f32 %v1389, %v1390
    %v1392 = vmul.f32 %v1355, %v1011
    %v1393 = vmul.f32 %v1356, %v1012
    %v1394 = vmul.f32 %v1357, %v1013
    %v1395 = vmul.f32 %v1358, %v1014
    %v1396 = vmul.f32 %v1359, %v1015
    %v1397 = vmul.f32 %v1360, %v1016
    %v1398 = vmul.f32 %v1361, %v1017
    %v1399 = vmul.f32 %v1362, %v1018
    %v1400 = vsel %vm802, %v1392, 0.0
    %v1401 = vsel %vm802, %v1393, 0.0
    %v1402 = vadd.f32 %v1400, %v1401
    %v1403 = vsel %vm802, %v1394, 0.0
    %v1404 = vadd.f32 %v1402, %v1403
    %v1405 = vsel %vm802, %v1395, 0.0
    %v1406 = vadd.f32 %v1404, %v1405
    %v1407 = vsel %vm802, %v1396, 0.0
    %v1408 = vadd.f32 %v1406, %v1407
    %v1409 = vsel %vm802, %v1397, 0.0
    %v1410 = vadd.f32 %v1408, %v1409
    %v1411 = vsel %vm802, %v1398, 0.0
    %v1412 = vadd.f32 %v1410, %v1411
    %v1413 = vsel %vm1105, %v1399, 0.0
    %v1414 = vadd.f32 %v1412, %v1413
    %v1415 = vrot.slane %v1414, 4
    %v1416 = vadd.f32 %v1414, %v1415
    %v1417 = vrot.slane %v1416, 2
    %v1418 = vadd.f32 %v1416, %v1417
    %v1419 = vrot.slane %v1418, 1
    %v1420 = vadd.f32 %v1418, %v1419
    %v1421 = vld [vmem:[%s37] sm:$0xff]
    %v1422 = vld [vmem:[%s37 + $0x8] sm:$0xff]
    %v1423 = vld [vmem:[%s37 + $0x10] sm:$0xff]
    %v1424 = vld [vmem:[%s37 + $0x18] sm:$0xff]
    %v1425 = vld [vmem:[%s39] sm:$0xff]
    %v1426 = vld [vmem:[%s39 + $0x8] sm:$0xff]
    %v1427 = vld [vmem:[%s39 + $0x10] sm:$0xff]
    %v1428 = vld [vmem:[%s39 + $0x18] sm:$0xff]
    %v1429 = vld [vmem:[%s41] sm:$0xff]
    %v1430 = vld [vmem:[%s41 + $0x8] sm:$0xff]
    %v1431 = vld [vmem:[%s41 + $0x10] sm:$0xff]
    %v1432 = vld [vmem:[%s41 + $0x18] sm:$0xff]
    %v1433 = vld [vmem:[%s41 + $0x20] sm:$0xff]
    %v1434 = vld [vmem:[%s41 + $0x28] sm:$0xff]
    %v1435 = vld [vmem:[%s41 + $0x30] sm:$0xff]
    %v1436 = vld [vmem:[%s41 + $0x38] sm:$0xff]
    %v1437 = vld [vmem:[%s41 + $0x40] sm:$0xff]
    %v1438 = vld [vmem:[%s41 + $0x48] sm:$0xff]
    %v1439 = vld [vmem:[%s41 + $0x50] sm:$0xff]
    %v1440 = vld [vmem:[%s41 + $0x58] sm:$0xff]
    %v1441 = vld [vmem:[%s41 + $0x60] sm:$0xff]
    %v1442 = vld [vmem:[%s41 + $0x68] sm:$0xff]
    %v1443 = vld [vmem:[%s41 + $0x70] sm:$0xff]
    %v1444 = vld [vmem:[%s41 + $0x78] sm:$0xff]
    %v1445 = vld [vmem:[%s41 + $0x80] sm:$0xff]
    %v1446 = vld [vmem:[%s41 + $0x88] sm:$0xff]
    %v1447 = vld [vmem:[%s41 + $0x90] sm:$0xff]
    %v1448 = vld [vmem:[%s41 + $0x98] sm:$0xff]
    %v1449 = vld [vmem:[%s41 + $0xa0] sm:$0xff]
    %v1450 = vld [vmem:[%s41 + $0xa8] sm:$0xff]
    %v1451 = vld [vmem:[%s41 + $0xb0] sm:$0xff]
    %v1452 = vld [vmem:[%s41 + $0xb8] sm:$0xff]
    %v1453 = vld [vmem:[%s41 + $0xc0] sm:$0xff]
    %v1454 = vld [vmem:[%s41 + $0xc8] sm:$0xff]
    %v1455 = vld [vmem:[%s41 + $0xd0] sm:$0xff]
    %v1456 = vld [vmem:[%s41 + $0xd8] sm:$0xff]
    %v1457 = vld [vmem:[%s41 + $0xe0] sm:$0xff]
    %v1458 = vld [vmem:[%s41 + $0xe8] sm:$0xff]
    %v1459 = vld [vmem:[%s41 + $0xf0] sm:$0xff]
    %v1460 = vld [vmem:[%s41 + $0xf8] sm:$0xff]
    %v1461 = vld [vmem:[%s43] sm:$0xff]
    %v1462 = vld [vmem:[%s43 + $0x8] sm:$0xff]
    %v1463 = vld [vmem:[%s43 + $0x10] sm:$0xff]
    %v1464 = vld [vmem:[%s43 + $0x18] sm:$0xff]
    %v1465 = vld [vmem:[%s45] sm:$0x1]
    %v1467 = vsel %vm802, %v965, 0
    %1469 = vmatpush.msra.mxu0 0.0
    %1470 = vmatpush.msra.mxu0 0.0
    %1471 = vmatpush.msra.mxu0 0.0
    %1472 = vmatpush.msra.mxu0 0.0
    %1473 = vmatpush.msra.mxu0 0.0
    %1474 = vmatpush.msra.mxu0 0.0
    %1475 = vmatpush.msra.mxu0 0.0
    %1476 = vmatpush.msra.mxu0 0.0
    %1477 = vmatpush.msra.mxu0 0.0
    %1478 = vmatpush.msra.mxu0 0.0
    %1479 = vmatpush.msra.mxu0 0.0
    %1480 = vmatpush.msra.mxu0 0.0
    %1481 = vmatpush.msra.mxu0 0.0
    %1482 = vmatpush.msra.mxu0 0.0
    %1483 = vmatpush.msra.mxu0 %v1423
    %1484 = vmatpush.msra.mxu0 %v1421
    %1485 = vmatmul.f32.gmra.mxu0 %v1467
    %v1486 = vpop.f32.mrf.mxu0
    %v1487 = vadd.f32 0.0, %v1486
    %1488 = vdwg.mxu0
    %1489 = vmatpush.msra.mxu0 0.0
    %1490 = vmatpush.msra.mxu0 0.0
    %1491 = vmatpush.msra.mxu0 0.0
    %1492 = vmatpush.msra.mxu0 0.0
    %1493 = vmatpush.msra.mxu0 0.0
    %1494 = vmatpush.msra.mxu0 0.0
    %1495 = vmatpush.msra.mxu0 0.0
    %1496 = vmatpush.msra.mxu0 0.0
    %1497 = vmatpush.msra.mxu0 0.0
    %1498 = vmatpush.msra.mxu0 0.0
    %1499 = vmatpush.msra.mxu0 0.0
    %1500 = vmatpush.msra.mxu0 0.0
    %1501 = vmatpush.msra.mxu0 0.0
    %1502 = vmatpush.msra.mxu0 0.0
    %1503 = vmatpush.msra.mxu0 %v1424
    %1504 = vmatpush.msra.mxu0 %v1422
    %1505 = vmatmul.f32.gmra.mxu0 %v1467
    %v1506 = vpop.f32.mrf.mxu0
    %v1507 = vadd.f32 0.0, %v1506
    %1508 = vdwg.mxu0
    %v1510 = vsel %vm802, %v979, 0
    %1512 = vmatpush.msra.mxu0 0.0
    %1513 = vmatpush.msra.mxu0 0.0
    %1514 = vmatpush.msra.mxu0 0.0
    %1515 = vmatpush.msra.mxu0 0.0
    %1516 = vmatpush.msra.mxu0 0.0
    %1517 = vmatpush.msra.mxu0 0.0
    %1518 = vmatpush.msra.mxu0 0.0
    %1519 = vmatpush.msra.mxu0 0.0
    %1520 = vmatpush.msra.mxu0 0.0
    %1521 = vmatpush.msra.mxu0 0.0
    %1522 = vmatpush.msra.mxu0 0.0
    %1523 = vmatpush.msra.mxu0 0.0
    %1524 = vmatpush.msra.mxu0 0.0
    %1525 = vmatpush.msra.mxu0 0.0
    %1526 = vmatpush.msra.mxu0 %v1427
    %1527 = vmatpush.msra.mxu0 %v1425
    %1528 = vmatmul.f32.gmra.mxu0 %v1510
    %v1529 = vpop.f32.mrf.mxu0
    %v1530 = vadd.f32 0.0, %v1529
    %1531 = vdwg.mxu0
    %1532 = vmatpush.msra.mxu0 0.0
    %1533 = vmatpush.msra.mxu0 0.0
    %1534 = vmatpush.msra.mxu0 0.0
    %1535 = vmatpush.msra.mxu0 0.0
    %1536 = vmatpush.msra.mxu0 0.0
    %1537 = vmatpush.msra.mxu0 0.0
    %1538 = vmatpush.msra.mxu0 0.0
    %1539 = vmatpush.msra.mxu0 0.0
    %1540 = vmatpush.msra.mxu0 0.0
    %1541 = vmatpush.msra.mxu0 0.0
    %1542 = vmatpush.msra.mxu0 0.0
    %1543 = vmatpush.msra.mxu0 0.0
    %1544 = vmatpush.msra.mxu0 0.0
    %1545 = vmatpush.msra.mxu0 0.0
    %1546 = vmatpush.msra.mxu0 %v1428
    %1547 = vmatpush.msra.mxu0 %v1426
    %1548 = vmatmul.f32.gmra.mxu0 %v1510
    %v1549 = vpop.f32.mrf.mxu0
    %v1550 = vadd.f32 0.0, %v1549
    %1551 = vdwg.mxu0
    %v1552 = vmul.f32 %v1487, %v1530
    %v1553 = vmul.f32 %v1507, %v1550
    %1554 = vmatpush.msra.mxu0 0.0
    %1555 = vmatpush.msra.mxu0 0.0
    %1556 = vmatpush.msra.mxu0 0.0
    %1557 = vmatpush.msra.mxu0 0.0
    %1558 = vmatpush.msra.mxu0 0.0
    %1559 = vmatpush.msra.mxu0 0.0
    %1560 = vmatpush.msra.mxu0 0.0
    %1561 = vmatpush.msra.mxu0 0.0
    %1562 = vmatpush.msra.mxu0 0.0
    %1563 = vmatpush.msra.mxu0 0.0
    %1564 = vmatpush.msra.mxu0 0.0
    %1565 = vmatpush.msra.mxu0 0.0
    %1566 = vmatpush.msra.mxu0 0.0
    %1567 = vmatpush.msra.mxu0 0.0
    %1568 = vmatpush.msra.mxu0 %v1464
    %1569 = vmatpush.msra.mxu0 %v1463
    %1570 = vmatmul.f32.gmra.mxu0 %v1510
    %v1571 = vpop.f32.mrf.mxu0
    %v1572 = vadd.f32 0.0, %v1571
    %1573 = vdwg.mxu0
    %1574 = vmatpush.msra.mxu0 0.0
    %1575 = vmatpush.msra.mxu0 0.0
    %1576 = vmatpush.msra.mxu0 0.0
    %1577 = vmatpush.msra.mxu0 0.0
    %1578 = vmatpush.msra.mxu0 0.0
    %1579 = vmatpush.msra.mxu0 0.0
    %1580 = vmatpush.msra.mxu0 0.0
    %1581 = vmatpush.msra.mxu0 0.0
    %1582 = vmatpush.msra.mxu0 0.0
    %1583 = vmatpush.msra.mxu0 0.0
    %1584 = vmatpush.msra.mxu0 0.0
    %1585 = vmatpush.msra.mxu0 0.0
    %1586 = vmatpush.msra.mxu0 0.0
    %1587 = vmatpush.msra.mxu0 0.0
    %1588 = vmatpush.msra.mxu0 %v1462
    %1589 = vmatpush.msra.mxu0 %v1461
    %1590 = vmatmul.f32.gmra.mxu0 %v1467
    %v1591 = vpop.f32.mrf.mxu0
    %v1592 = vadd.f32 %v1572, %v1591
    %1593 = vdwg.mxu0
    %1594 = vmatpush.msra.mxu0 %v1444
    %1595 = vmatpush.msra.mxu0 %v1443
    %1596 = vmatpush.msra.mxu0 %v1442
    %1597 = vmatpush.msra.mxu0 %v1441
    %1598 = vmatpush.msra.mxu0 %v1440
    %1599 = vmatpush.msra.mxu0 %v1439
    %1600 = vmatpush.msra.mxu0 %v1438
    %1601 = vmatpush.msra.mxu0 %v1437
    %1602 = vmatpush.msra.mxu0 %v1436
    %1603 = vmatpush.msra.mxu0 %v1435
    %1604 = vmatpush.msra.mxu0 %v1434
    %1605 = vmatpush.msra.mxu0 %v1433
    %1606 = vmatpush.msra.mxu0 %v1432
    %1607 = vmatpush.msra.mxu0 %v1431
    %1608 = vmatpush.msra.mxu0 %v1430
    %1609 = vmatpush.msra.mxu0 %v1429
    %1610 = vmatmul.f32.gmra.mxu0 %v1552
    %v1611 = vpop.f32.mrf.mxu0
    %v1612 = vadd.f32 %v1592, %v1611
    %1613 = vdwg.mxu0
    %1614 = vmatpush.msra.mxu0 %v1460
    %1615 = vmatpush.msra.mxu0 %v1459
    %1616 = vmatpush.msra.mxu0 %v1458
    %1617 = vmatpush.msra.mxu0 %v1457
    %1618 = vmatpush.msra.mxu0 %v1456
    %1619 = vmatpush.msra.mxu0 %v1455
    %1620 = vmatpush.msra.mxu0 %v1454
    %1621 = vmatpush.msra.mxu0 %v1453
    %1622 = vmatpush.msra.mxu0 %v1452
    %1623 = vmatpush.msra.mxu0 %v1451
    %1624 = vmatpush.msra.mxu0 %v1450
    %1625 = vmatpush.msra.mxu0 %v1449
    %1626 = vmatpush.msra.mxu0 %v1448
    %1627 = vmatpush.msra.mxu0 %v1447
    %1628 = vmatpush.msra.mxu0 %v1446
    %1629 = vmatpush.msra.mxu0 %v1445
    %1630 = vmatmul.f32.gmra.mxu0 %v1553
    %v1631 = vpop.f32.mrf.mxu0
    %v1632 = vadd.f32 %v1612, %v1631
    %1633 = vdwg.mxu0
    %v1634 = vadd.f32 %v1632, %v1465
    %v1635 = vmax.f32 %v1634, 0.0
    %v1637 = vsel %vm802, %v1391, 0
    %1639 = vmatpush.msra.mxu0 0.0
    %1640 = vmatpush.msra.mxu0 0.0
    %1641 = vmatpush.msra.mxu0 0.0
    %1642 = vmatpush.msra.mxu0 0.0
    %1643 = vmatpush.msra.mxu0 0.0
    %1644 = vmatpush.msra.mxu0 0.0
    %1645 = vmatpush.msra.mxu0 0.0
    %1646 = vmatpush.msra.mxu0 0.0
    %1647 = vmatpush.msra.mxu0 0.0
    %1648 = vmatpush.msra.mxu0 0.0
    %1649 = vmatpush.msra.mxu0 0.0
    %1650 = vmatpush.msra.mxu0 0.0
    %1651 = vmatpush.msra.mxu0 0.0
    %1652 = vmatpush.msra.mxu0 0.0
    %1653 = vmatpush.msra.mxu0 %v1423
    %1654 = vmatpush.msra.mxu0 %v1421
    %1655 = vmatmul.f32.gmra.mxu0 %v1637
    %v1656 = vpop.f32.mrf.mxu0
    %v1657 = vadd.f32 0.0, %v1656
    %1658 = vdwg.mxu0
    %1659 = vmatpush.msra.mxu0 0.0
    %1660 = vmatpush.msra.mxu0 0.0
    %1661 = vmatpush.msra.mxu0 0.0
    %1662 = vmatpush.msra.mxu0 0.0
    %1663 = vmatpush.msra.mxu0 0.0
    %1664 = vmatpush.msra.mxu0 0.0
    %1665 = vmatpush.msra.mxu0 0.0
    %1666 = vmatpush.msra.mxu0 0.0
    %1667 = vmatpush.msra.mxu0 0.0
    %1668 = vmatpush.msra.mxu0 0.0
    %1669 = vmatpush.msra.mxu0 0.0
    %1670 = vmatpush.msra.mxu0 0.0
    %1671 = vmatpush.msra.mxu0 0.0
    %1672 = vmatpush.msra.mxu0 0.0
    %1673 = vmatpush.msra.mxu0 %v1424
    %1674 = vmatpush.msra.mxu0 %v1422
    %1675 = vmatmul.f32.gmra.mxu0 %v1637
    %v1676 = vpop.f32.mrf.mxu0
    %v1677 = vadd.f32 0.0, %v1676
    %1678 = vdwg.mxu0
    %v1680 = vsel %vm802, %v1420, 0
    %1682 = vmatpush.msra.mxu0 0.0
    %1683 = vmatpush.msra.mxu0 0.0
    %1684 = vmatpush.msra.mxu0 0.0
    %1685 = vmatpush.msra.mxu0 0.0
    %1686 = vmatpush.msra.mxu0 0.0
    %1687 = vmatpush.msra.mxu0 0.0
    %1688 = vmatpush.msra.mxu0 0.0
    %1689 = vmatpush.msra.mxu0 0.0
    %1690 = vmatpush.msra.mxu0 0.0
    %1691 = vmatpush.msra.mxu0 0.0
    %1692 = vmatpush.msra.mxu0 0.0
    %1693 = vmatpush.msra.mxu0 0.0
    %1694 = vmatpush.msra.mxu0 0.0
    %1695 = vmatpush.msra.mxu0 0.0
    %1696 = vmatpush.msra.mxu0 %v1427
    %1697 = vmatpush.msra.mxu0 %v1425
    %1698 = vmatmul.f32.gmra.mxu0 %v1680
    %v1699 = vpop.f32.mrf.mxu0
    %v1700 = vadd.f32 0.0, %v1699
    %1701 = vdwg.mxu0
    %1702 = vmatpush.msra.mxu0 0.0
    %1703 = vmatpush.msra.mxu0 0.0
    %1704 = vmatpush.msra.mxu0 0.0
    %1705 = vmatpush.msra.mxu0 0.0
    %1706 = vmatpush.msra.mxu0 0.0
    %1707 = vmatpush.msra.mxu0 0.0
    %1708 = vmatpush.msra.mxu0 0.0
    %1709 = vmatpush.msra.mxu0 0.0
    %1710 = vmatpush.msra.mxu0 0.0
    %1711 = vmatpush.msra.mxu0 0.0
    %1712 = vmatpush.msra.mxu0 0.0
    %1713 = vmatpush.msra.mxu0 0.0
    %1714 = vmatpush.msra.mxu0 0.0
    %1715 = vmatpush.msra.mxu0 0.0
    %1716 = vmatpush.msra.mxu0 %v1428
    %1717 = vmatpush.msra.mxu0 %v1426
    %1718 = vmatmul.f32.gmra.mxu0 %v1680
    %v1719 = vpop.f32.mrf.mxu0
    %v1720 = vadd.f32 0.0, %v1719
    %1721 = vdwg.mxu0
    %v1722 = vmul.f32 %v1657, %v1700
    %v1723 = vmul.f32 %v1677, %v1720
    %1724 = vmatpush.msra.mxu0 0.0
    %1725 = vmatpush.msra.mxu0 0.0
    %1726 = vmatpush.msra.mxu0 0.0
    %1727 = vmatpush.msra.mxu0 0.0
    %1728 = vmatpush.msra.mxu0 0.0
    %1729 = vmatpush.msra.mxu0 0.0
    %1730 = vmatpush.msra.mxu0 0.0
    %1731 = vmatpush.msra.mxu0 0.0
    %1732 = vmatpush.msra.mxu0 0.0
    %1733 = vmatpush.msra.mxu0 0.0
    %1734 = vmatpush.msra.mxu0 0.0
    %1735 = vmatpush.msra.mxu0 0.0
    %1736 = vmatpush.msra.mxu0 0.0
    %1737 = vmatpush.msra.mxu0 0.0
    %1738 = vmatpush.msra.mxu0 %v1464
    %1739 = vmatpush.msra.mxu0 %v1463
    %1740 = vmatmul.f32.gmra.mxu0 %v1680
    %v1741 = vpop.f32.mrf.mxu0
    %v1742 = vadd.f32 0.0, %v1741
    %1743 = vdwg.mxu0
    %1744 = vmatpush.msra.mxu0 0.0
    %1745 = vmatpush.msra.mxu0 0.0
    %1746 = vmatpush.msra.mxu0 0.0
    %1747 = vmatpush.msra.mxu0 0.0
    %1748 = vmatpush.msra.mxu0 0.0
    %1749 = vmatpush.msra.mxu0 0.0
    %1750 = vmatpush.msra.mxu0 0.0
    %1751 = vmatpush.msra.mxu0 0.0
    %1752 = vmatpush.msra.mxu0 0.0
    %1753 = vmatpush.msra.mxu0 0.0
    %1754 = vmatpush.msra.mxu0 0.0
    %1755 = vmatpush.msra.mxu0 0.0
    %1756 = vmatpush.msra.mxu0 0.0
    %1757 = vmatpush.msra.mxu0 0.0
    %1758 = vmatpush.msra.mxu0 %v1462
    %1759 = vmatpush.msra.mxu0 %v1461
    %1760 = vmatmul.f32.gmra.mxu0 %v1637
    %v1761 = vpop.f32.mrf.mxu0
    %v1762 = vadd.f32 %v1742, %v1761
    %1763 = vdwg.mxu0
    %1764 = vmatpush.msra.mxu0 %v1444
    %1765 = vmatpush.msra.mxu0 %v1443
    %1766 = vmatpush.msra.mxu0 %v1442
    %1767 = vmatpush.msra.mxu0 %v1441
    %1768 = vmatpush.msra.mxu0 %v1440
    %1769 = vmatpush.msra.mxu0 %v1439
    %1770 = vmatpush.msra.mxu0 %v1438
    %1771 = vmatpush.msra.mxu0 %v1437
    %1772 = vmatpush.msra.mxu0 %v1436
    %1773 = vmatpush.msra.mxu0 %v1435
    %1774 = vmatpush.msra.mxu0 %v1434
    %1775 = vmatpush.msra.mxu0 %v1433
    %1776 = vmatpush.msra.mxu0 %v1432
    %1777 = vmatpush.msra.mxu0 %v1431
    %1778 = vmatpush.msra.mxu0 %v1430
    %1779 = vmatpush.msra.mxu0 %v1429
    %1780 = vmatmul.f32.gmra.mxu0 %v1722
    %v1781 = vpop.f32.mrf.mxu0
    %v1782 = vadd.f32 %v1762, %v1781
    %1783 = vdwg.mxu0
    %1784 = vmatpush.msra.mxu0 %v1460
    %1785 = vmatpush.msra.mxu0 %v1459
    %1786 = vmatpush.msra.mxu0 %v1458
    %1787 = vmatpush.msra.mxu0 %v1457
    %1788 = vmatpush.msra.mxu0 %v1456
    %1789 = vmatpush.msra.mxu0 %v1455
    %1790 = vmatpush.msra.mxu0 %v1454
    %1791 = vmatpush.msra.mxu0 %v1453
    %1792 = vmatpush.msra.mxu0 %v1452
    %1793 = vmatpush.msra.mxu0 %v1451
    %1794 = vmatpush.msra.mxu0 %v1450
    %1795 = vmatpush.msra.mxu0 %v1449
    %1796 = vmatpush.msra.mxu0 %v1448
    %1797 = vmatpush.msra.mxu0 %v1447
    %1798 = vmatpush.msra.mxu0 %v1446
    %1799 = vmatpush.msra.mxu0 %v1445
    %1800 = vmatmul.f32.gmra.mxu0 %v1723
    %v1801 = vpop.f32.mrf.mxu0
    %v1802 = vadd.f32 %v1782, %v1801
    %1803 = vdwg.mxu0
    %v1804 = vadd.f32 %v1802, %v1465
    %v1805 = vmax.f32 %v1804, 0.0
    %v1806 = vld [vmem:[%s55] sm:$0xff]
    %v1807 = vld [vmem:[%s55 + $0x8] sm:$0xf]
    %v1809 = vsel %vm154, %v1806, 0
    %v1812 = vsel %vm154, %v1807, 0
    %v1814 = vsel %vm164, %v373, 0
    %1816 = vmatpush.msra.mxu0 0.0
    %1817 = vmatpush.msra.mxu0 0.0
    %1818 = vmatpush.msra.mxu0 0.0
    %1819 = vmatpush.msra.mxu0 0.0
    %1820 = vmatpush.msra.mxu0 0.0
    %1821 = vmatpush.msra.mxu0 0.0
    %1822 = vmatpush.msra.mxu0 0.0
    %1823 = vmatpush.msra.mxu0 0.0
    %1824 = vmatpush.msra.mxu0 0.0
    %1825 = vmatpush.msra.mxu0 0.0
    %1826 = vmatpush.msra.mxu0 0.0
    %1827 = vmatpush.msra.mxu0 0.0
    %1828 = vmatpush.msra.mxu0 0.0
    %1829 = vmatpush.msra.mxu0 %v1814
    %1830 = vmatpush.msra.mxu0 %v370
    %1831 = vmatpush.msra.mxu0 %v367
    %1832 = vmatmul.f32.gmra.mxu0 %v1809
    %v1833 = vpop.f32.mrf.mxu0
    %v1834 = vadd.f32 0.0, %v1833
    %1835 = vmatmul.f32.gmra.mxu0 %v1812
    %v1836 = vpop.f32.mrf.mxu0
    %v1837 = vadd.f32 0.0, %v1836
    %1838 = vdwg.mxu0
    %v1839 = vld [vmem:[%s57] sm:$0xff]
    %v1840 = vld [vmem:[%s57 + $0x8] sm:$0xf]
    %v1842 = vsel %vm154, %v1839, 0
    %v1845 = vsel %vm154, %v1840, 0
    %1847 = vmatpush.msra.mxu0 0.0
    %1848 = vmatpush.msra.mxu0 0.0
    %1849 = vmatpush.msra.mxu0 0.0
    %1850 = vmatpush.msra.mxu0 0.0
    %1851 = vmatpush.msra.mxu0 0.0
    %1852 = vmatpush.msra.mxu0 0.0
    %1853 = vmatpush.msra.mxu0 0.0
    %1854 = vmatpush.msra.mxu0 0.0
    %1855 = vmatpush.msra.mxu0 0.0
    %1856 = vmatpush.msra.mxu0 0.0
    %1857 = vmatpush.msra.mxu0 0.0
    %1858 = vmatpush.msra.mxu0 0.0
    %1859 = vmatpush.msra.mxu0 0.0
    %1860 = vmatpush.msra.mxu0 %v1814
    %1861 = vmatpush.msra.mxu0 %v370
    %1862 = vmatpush.msra.mxu0 %v367
    %1863 = vmatmul.f32.gmra.mxu0 %v1842
    %v1864 = vpop.f32.mrf.mxu0
    %v1865 = vadd.f32 0.0, %v1864
    %1866 = vmatmul.f32.gmra.mxu0 %v1845
    %v1867 = vpop.f32.mrf.mxu0
    %v1868 = vadd.f32 0.0, %v1867
    %1869 = vdwg.mxu0
    %v1871 = vsel %vm802, %v1834, 0
    %v1874 = vsel %vm802, %v1837, 0
    %v1877 = vsel %vm802, %v1865, 0
    %v1880 = vsel %vm802, %v1868, 0
    %1882 = vmatpush.xpose.msra.mxu0 0.0
    %1883 = vmatpush.xpose.msra.mxu0 0.0
    %1884 = vmatpush.xpose.msra.mxu0 0.0
    %1885 = vmatpush.xpose.msra.mxu0 0.0
    %1886 = vmatpush.xpose.msra.mxu0 0.0
    %1887 = vmatpush.xpose.msra.mxu0 0.0
    %1888 = vmatpush.xpose.msra.mxu0 0.0
    %1889 = vmatpush.xpose.msra.mxu0 0.0
    %1890 = vmatpush.xpose.msra.mxu0 0.0
    %1891 = vmatpush.xpose.msra.mxu0 0.0
    %1892 = vmatpush.xpose.msra.mxu0 0.0
    %1893 = vmatpush.xpose.msra.mxu0 0.0
    %1894 = vmatpush.xpose.msra.mxu0 0.0
    %1895 = vmatpush.xpose.msra.mxu0 0.0
    %1896 = vmatpush.xpose.msra.mxu0 %v1880
    %1897 = vmatpush.xpose.msra.mxu0 %v1877
    %1898 = vmatmul.f32.gmra.mxu0 %v1871
    %v1899 = vpop.f32.mrf.mxu0
    %v1900 = vadd.f32 0.0, %v1899
    %1901 = vmatmul.f32.gmra.mxu0 %v1874
    %v1902 = vpop.f32.mrf.mxu0
    %v1903 = vadd.f32 0.0, %v1902
    %1904 = vdwg.mxu0
    %vm1905 = vcmask 97280
    %v1906 = vsel %vm1905, %v1900, inf
    %vm1907 = vcmask 93184
    %v1908 = vsel %vm1907, %v1903, inf
    %v1909 = vmin.f32 %v1906, %v1908
    %1910 = vmin.xlane.f32.xlu0 %v1909
    %v1911 = vpop.xlane.xlu0 %1910
    %v1912 = vrot.slane %v1911, 4
    %v1913 = vmin.f32 %v1911, %v1912
    %v1914 = vrot.slane %v1913, 2
    %v1915 = vmin.f32 %v1913, %v1914
    %v1916 = vrot.slane %v1915, 1
    %v1917 = vmin.f32 %v1915, %v1916
    %s1918 = vtos %v1917
    %v1919 = vstv %s1918
    %v1920 = vsel %vm1905, %v1900, -inf
    %v1921 = vsel %vm1907, %v1903, -inf
    %v1922 = vmax.f32 %v1920, %v1921
    %1923 = vmax.xlane.f32.xlu0 %v1922
    %v1924 = vpop.xlane.xlu0 %1923
    %v1925 = vrot.slane %v1924, 4
    %v1926 = vmax.f32 %v1924, %v1925
    %v1927 = vrot.slane %v1926, 2
    %v1928 = vmax.f32 %v1926, %v1927
    %v1929 = vrot.slane %v1928, 1
    %v1930 = vmax.f32 %v1928, %v1929
    %s1931 = vtos %v1930
    %v1932 = vstv %s1931
    %v1933 = vsub.f32 %v1932, %v1919
    %v1934 = vmax.f32 %v1933, 1e-12
    %v1935 = vrcp.pop %v1934
    %v1936 = vmul.f32 %v1934, %v1935
    %v1937 = vsub.f32 1.0, %v1936
    %v1938 = vmul.f32 %v1935, %v1937
    %v1939 = vadd.f32 %v1935, %v1938
    %vm1940 = vweird.f32 %v1934
    %vm1941 = vweird.f32 %v1935
    %vm1942 = vmor %vm1940, %vm1941
    %v1943 = vsel %vm1942, %v1935, %v1939
    %v1944 = vand.u32 2147483647, %v1934
    %vm1945 = vcmp.eq.f32.partialorder %v1944, 8.507059e+37
    %v1946 = vand.u32 %v1934, 2147483648
    %v1947 = vor.u32 1.1754944e-38, %v1946
    %v1948 = vsel %vm1945, %v1947, %v1943
    %v1949 = vmul.f32 16.0, %v1948
    %v1950 = vsub.f32 %v1900, %v1919
    %v1951 = vsub.f32 %v1903, %v1919
    %v1952 = vmul.f32 %v1950, %v1949
    %v1953 = vmul.f32 %v1951, %v1949
    %v1954 = vfloor.f32 %v1952
    %v1955 = vfloor.f32 %v1953
    %v1956 = vmax.f32 %v1954, 0.0
    %v1957 = vmax.f32 %v1955, 0.0
    %v1958 = vmin.f32 %v1956, 15.0
    %v1959 = vmin.f32 %v1957, 15.0
    %v1960 = vld [vmem:[%s59] sm:$0xff]
    %v1961 = vld [vmem:[%s59 + $0x8] sm:$0xff]
    %v1962 = vld [vmem:[%s59 + $0x10] sm:$0xf]
    %v1963 = vld [vmem:[%s59 + $0x18] sm:$0xf]
    %v1965 = vsel %vm1905, %v1958, 0
    %v1968 = vsel %vm1905, %v1959, 0
    %v1971 = vsel %vm427, %v1962, 0
    %v1974 = vsel %vm427, %v1963, 0
    %1976 = vmatpush.msra.mxu0 0.0
    %1977 = vmatpush.msra.mxu0 0.0
    %1978 = vmatpush.msra.mxu0 0.0
    %1979 = vmatpush.msra.mxu0 0.0
    %1980 = vmatpush.msra.mxu0 0.0
    %1981 = vmatpush.msra.mxu0 0.0
    %1982 = vmatpush.msra.mxu0 0.0
    %1983 = vmatpush.msra.mxu0 0.0
    %1984 = vmatpush.msra.mxu0 0.0
    %1985 = vmatpush.msra.mxu0 0.0
    %1986 = vmatpush.msra.mxu0 0.0
    %1987 = vmatpush.msra.mxu0 0.0
    %1988 = vmatpush.msra.mxu0 0.0
    %1989 = vmatpush.msra.mxu0 0.0
    %1990 = vmatpush.msra.mxu0 %v1971
    %1991 = vmatpush.msra.mxu0 %v1960
    %1992 = vmatmul.f32.gmra.mxu0 %v1965
    %v1993 = vpop.f32.mrf.mxu0
    %v1994 = vadd.f32 0.0, %v1993
    %1995 = vmatmul.f32.gmra.mxu0 %v1968
    %v1996 = vpop.f32.mrf.mxu0
    %v1997 = vadd.f32 0.0, %v1996
    %1998 = vdwg.mxu0
    %1999 = vmatpush.msra.mxu0 0.0
    %2000 = vmatpush.msra.mxu0 0.0
    %2001 = vmatpush.msra.mxu0 0.0
    %2002 = vmatpush.msra.mxu0 0.0
    %2003 = vmatpush.msra.mxu0 0.0
    %2004 = vmatpush.msra.mxu0 0.0
    %2005 = vmatpush.msra.mxu0 0.0
    %2006 = vmatpush.msra.mxu0 0.0
    %2007 = vmatpush.msra.mxu0 0.0
    %2008 = vmatpush.msra.mxu0 0.0
    %2009 = vmatpush.msra.mxu0 0.0
    %2010 = vmatpush.msra.mxu0 0.0
    %2011 = vmatpush.msra.mxu0 0.0
    %2012 = vmatpush.msra.mxu0 0.0
    %2013 = vmatpush.msra.mxu0 %v1974
    %2014 = vmatpush.msra.mxu0 %v1961
    %2015 = vmatmul.f32.gmra.mxu0 %v1965
    %v2016 = vpop.f32.mrf.mxu0
    %v2017 = vadd.f32 0.0, %v2016
    %2018 = vmatmul.f32.gmra.mxu0 %v1968
    %v2019 = vpop.f32.mrf.mxu0
    %v2020 = vadd.f32 0.0, %v2019
    %2021 = vdwg.mxu0
    %v2022 = vld [vmem:[%s61] sm:$0x3]
    %v2024 = vperm.slane %v2022, 0
    %v2025 = vperm.slane %v2022, 1
    %vm2028 = vcmp.eq.f32.partialorder %v1994, %v2024
    %vm2029 = vcmp.eq.f32.partialorder %v2017, %v2025
    %vm2030 = vcmp.eq.f32.partialorder %v1997, %v2024
    %vm2031 = vcmp.eq.f32.partialorder %v2020, %v2025
    %v2032 = vsel %vm2028, 1, 0
    %v2033 = vsel %vm2029, 1, 0
    %v2034 = vsel %vm2030, 1, 0
    %v2035 = vsel %vm2031, 1, 0
    %v2036 = vcvt.s32.f32 %v2032
    %v2037 = vcvt.s32.f32 %v2033
    %v2038 = vcvt.s32.f32 %v2034
    %v2039 = vcvt.s32.f32 %v2035
    %v2040 = vld [vmem:[%s63] sm:$0xff]
    %v2041 = vld [vmem:[%s63 + $0x8] sm:$0xff]
    %v2042 = vld [vmem:[%s63 + $0x10] sm:$0xff]
    %v2043 = vld [vmem:[%s63 + $0x18] sm:$0xff]
    %v2044 = vld [vmem:[%s63 + $0x20] sm:$0xff]
    %v2045 = vld [vmem:[%s63 + $0x28] sm:$0xff]
    %v2046 = vld [vmem:[%s63 + $0x30] sm:$0xff]
    %v2047 = vld [vmem:[%s63 + $0x38] sm:$0xff]
    %v2048 = vld [vmem:[%s63 + $0x40] sm:$0xff]
    %v2049 = vld [vmem:[%s63 + $0x48] sm:$0xff]
    %v2050 = vld [vmem:[%s63 + $0x50] sm:$0xff]
    %v2051 = vld [vmem:[%s63 + $0x58] sm:$0xff]
    %v2052 = vld [vmem:[%s63 + $0x60] sm:$0xff]
    %v2053 = vld [vmem:[%s63 + $0x68] sm:$0xff]
    %v2054 = vld [vmem:[%s63 + $0x70] sm:$0xff]
    %v2055 = vld [vmem:[%s63 + $0x78] sm:$0xff]
    %v2056 = vld [vmem:[%s63 + $0x80] sm:$0xff]
    %v2057 = vld [vmem:[%s63 + $0x88] sm:$0xff]
    %v2058 = vld [vmem:[%s63 + $0x90] sm:$0xff]
    %v2059 = vld [vmem:[%s63 + $0x98] sm:$0xff]
    %v2060 = vld [vmem:[%s63 + $0xa0] sm:$0xff]
    %v2061 = vld [vmem:[%s63 + $0xa8] sm:$0xff]
    %v2062 = vld [vmem:[%s63 + $0xb0] sm:$0xff]
    %v2063 = vld [vmem:[%s63 + $0xb8] sm:$0xff]
    %vm2064 = vcmask 523264
    %v2066 = vsel %vm2064, %v2037, 0
    %v2069 = vsel %vm2064, %v2039, 0
    %2071 = vmatpush.msra.mxu0 %v2055
    %2072 = vmatpush.msra.mxu0 %v2054
    %2073 = vmatpush.msra.mxu0 %v2053
    %2074 = vmatpush.msra.mxu0 %v2052
    %2075 = vmatpush.msra.mxu0 %v2051
    %2076 = vmatpush.msra.mxu0 %v2050
    %2077 = vmatpush.msra.mxu0 %v2049
    %2078 = vmatpush.msra.mxu0 %v2048
    %2079 = vmatpush.msra.mxu0 %v2047
    %2080 = vmatpush.msra.mxu0 %v2046
    %2081 = vmatpush.msra.mxu0 %v2045
    %2082 = vmatpush.msra.mxu0 %v2044
    %2083 = vmatpush.msra.mxu0 %v2043
    %2084 = vmatpush.msra.mxu0 %v2042
    %2085 = vmatpush.msra.mxu0 %v2041
    %2086 = vmatpush.msra.mxu0 %v2040
    %2087 = vmatmul.f32.gmra.mxu0 %v2036
    %v2088 = vpop.f32.mrf.mxu0
    %v2089 = vadd.f32 0.0, %v2088
    %2090 = vmatmul.f32.gmra.mxu0 %v2038
    %v2091 = vpop.f32.mrf.mxu0
    %v2092 = vadd.f32 0.0, %v2091
    %2093 = vdwg.mxu0
    %2094 = vmatpush.msra.mxu0 0.0
    %2095 = vmatpush.msra.mxu0 0.0
    %2096 = vmatpush.msra.mxu0 0.0
    %2097 = vmatpush.msra.mxu0 0.0
    %2098 = vmatpush.msra.mxu0 0.0
    %2099 = vmatpush.msra.mxu0 0.0
    %2100 = vmatpush.msra.mxu0 0.0
    %2101 = vmatpush.msra.mxu0 0.0
    %2102 = vmatpush.msra.mxu0 %v2063
    %2103 = vmatpush.msra.mxu0 %v2062
    %2104 = vmatpush.msra.mxu0 %v2061
    %2105 = vmatpush.msra.mxu0 %v2060
    %2106 = vmatpush.msra.mxu0 %v2059
    %2107 = vmatpush.msra.mxu0 %v2058
    %2108 = vmatpush.msra.mxu0 %v2057
    %2109 = vmatpush.msra.mxu0 %v2056
    %2110 = vmatmul.f32.gmra.mxu0 %v2066
    %v2111 = vpop.f32.mrf.mxu0
    %v2112 = vadd.f32 %v2089, %v2111
    %2113 = vmatmul.f32.gmra.mxu0 %v2069
    %v2114 = vpop.f32.mrf.mxu0
    %v2115 = vadd.f32 %v2092, %v2114
    %2116 = vdwg.mxu0
    %v2117 = vsel %vm802, %v2112, 0.0
    %v2118 = vsel %vm1105, %v2115, 0.0
    %v2119 = vadd.f32 %v2117, %v2118
    %v2120 = vrot.slane %v2119, 4
    %v2121 = vadd.f32 %v2119, %v2120
    %v2122 = vrot.slane %v2121, 2
    %v2123 = vadd.f32 %v2121, %v2122
    %v2124 = vrot.slane %v2123, 1
    %v2125 = vadd.f32 %v2123, %v2124
    %vm2126 = vcmask 122880
    %v2127 = vsel %vm2126, %v2125, 0.0
    %2128 = vadd.xlane.f32.xlu0 %v2127
    %v2129 = vpop.xlane.xlu0 %2128
    %v2130 = vrot.slane %v2129, 4
    %v2131 = vadd.f32 %v2129, %v2130
    %v2132 = vrot.slane %v2131, 2
    %v2133 = vadd.f32 %v2131, %v2132
    %v2134 = vrot.slane %v2133, 1
    %v2135 = vadd.f32 %v2133, %v2134
    %s2136 = vtos %v2135
    %v2137 = vstv %s2136
    %v2138 = vrcp.pop %v2137
    %v2139 = vmul.f32 %v2137, %v2138
    %v2140 = vsub.f32 1.0, %v2139
    %v2141 = vmul.f32 %v2138, %v2140
    %v2142 = vadd.f32 %v2138, %v2141
    %vm2143 = vweird.f32 %v2137
    %vm2144 = vweird.f32 %v2138
    %vm2145 = vmor %vm2143, %vm2144
    %v2146 = vsel %vm2145, %v2138, %v2142
    %v2147 = vand.u32 2147483647, %v2137
    %vm2148 = vcmp.eq.f32.partialorder %v2147, 8.507059e+37
    %v2149 = vand.u32 %v2137, 2147483648
    %v2150 = vor.u32 1.1754944e-38, %v2149
    %v2151 = vsel %vm2148, %v2150, %v2146
    %v2152 = vmul.f32 %v2125, %v2151
    %v2153 = vld [vmem:[%s47] sm:$0xff]
    %v2154 = vld [vmem:[%s47 + $0x8] sm:$0xff]
    %v2155 = vld [vmem:[%s47 + $0x10] sm:$0xff]
    %v2156 = vld [vmem:[%s47 + $0x18] sm:$0xff]
    %v2158 = vsel %vm802, %v1805, 0
    %2160 = vmatpush.msra.mxu0 0.0
    %2161 = vmatpush.msra.mxu0 0.0
    %2162 = vmatpush.msra.mxu0 0.0
    %2163 = vmatpush.msra.mxu0 0.0
    %2164 = vmatpush.msra.mxu0 0.0
    %2165 = vmatpush.msra.mxu0 0.0
    %2166 = vmatpush.msra.mxu0 0.0
    %2167 = vmatpush.msra.mxu0 0.0
    %2168 = vmatpush.msra.mxu0 0.0
    %2169 = vmatpush.msra.mxu0 0.0
    %2170 = vmatpush.msra.mxu0 0.0
    %2171 = vmatpush.msra.mxu0 0.0
    %2172 = vmatpush.msra.mxu0 0.0
    %2173 = vmatpush.msra.mxu0 0.0
    %2174 = vmatpush.msra.mxu0 %v2156
    %2175 = vmatpush.msra.mxu0 %v2155
    %2176 = vmatmul.f32.gmra.mxu0 %v2158
    %v2177 = vpop.f32.mrf.mxu0
    %v2178 = vadd.f32 0.0, %v2177
    %2179 = vdwg.mxu0
    %v2181 = vsel %vm802, %v1635, 0
    %2183 = vmatpush.msra.mxu0 0.0
    %2184 = vmatpush.msra.mxu0 0.0
    %2185 = vmatpush.msra.mxu0 0.0
    %2186 = vmatpush.msra.mxu0 0.0
    %2187 = vmatpush.msra.mxu0 0.0
    %2188 = vmatpush.msra.mxu0 0.0
    %2189 = vmatpush.msra.mxu0 0.0
    %2190 = vmatpush.msra.mxu0 0.0
    %2191 = vmatpush.msra.mxu0 0.0
    %2192 = vmatpush.msra.mxu0 0.0
    %2193 = vmatpush.msra.mxu0 0.0
    %2194 = vmatpush.msra.mxu0 0.0
    %2195 = vmatpush.msra.mxu0 0.0
    %2196 = vmatpush.msra.mxu0 0.0
    %2197 = vmatpush.msra.mxu0 %v2154
    %2198 = vmatpush.msra.mxu0 %v2153
    %2199 = vmatmul.f32.gmra.mxu0 %v2181
    %v2200 = vpop.f32.mrf.mxu0
    %v2201 = vadd.f32 %v2178, %v2200
    %2202 = vdwg.mxu0
    %v2203 = vld [vmem:[%s47 + $0x20] sm:$0xff]
    %v2204 = vld [vmem:[%s47 + $0x28] sm:$0xff]
    %v2206 = vsel %vm802, %v2152, 0
    %2208 = vmatpush.msra.mxu0 0.0
    %2209 = vmatpush.msra.mxu0 0.0
    %2210 = vmatpush.msra.mxu0 0.0
    %2211 = vmatpush.msra.mxu0 0.0
    %2212 = vmatpush.msra.mxu0 0.0
    %2213 = vmatpush.msra.mxu0 0.0
    %2214 = vmatpush.msra.mxu0 0.0
    %2215 = vmatpush.msra.mxu0 0.0
    %2216 = vmatpush.msra.mxu0 0.0
    %2217 = vmatpush.msra.mxu0 0.0
    %2218 = vmatpush.msra.mxu0 0.0
    %2219 = vmatpush.msra.mxu0 0.0
    %2220 = vmatpush.msra.mxu0 0.0
    %2221 = vmatpush.msra.mxu0 0.0
    %2222 = vmatpush.msra.mxu0 %v2204
    %2223 = vmatpush.msra.mxu0 %v2203
    %2224 = vmatmul.f32.gmra.mxu0 %v2206
    %v2225 = vpop.f32.mrf.mxu0
    %v2226 = vadd.f32 0.0, %v2225
    %2227 = vdwg.mxu0
    %v2228 = vadd.f32 %v2201, %v2226
    %v2229 = vld [vmem:[%s49] sm:$0x1]
    %v2230 = vadd.f32 %v2228, %v2229
    %v2231 = vmax.f32 %v2230, 0.0
    %v2232 = vld [vmem:[%s51] sm:$0xff]
    %v2233 = vld [vmem:[%s51 + $0x8] sm:$0xff]
    %v2234 = vld [vmem:[#allocation2] sm:$0x1]
    %v2236 = vsel %vm802, %v2231, 0
    %2238 = vmatpush.msra.mxu0 0.0
    %2239 = vmatpush.msra.mxu0 0.0
    %2240 = vmatpush.msra.mxu0 0.0
    %2241 = vmatpush.msra.mxu0 0.0
    %2242 = vmatpush.msra.mxu0 0.0
    %2243 = vmatpush.msra.mxu0 0.0
    %2244 = vmatpush.msra.mxu0 0.0
    %2245 = vmatpush.msra.mxu0 0.0
    %2246 = vmatpush.msra.mxu0 0.0
    %2247 = vmatpush.msra.mxu0 0.0
    %2248 = vmatpush.msra.mxu0 0.0
    %2249 = vmatpush.msra.mxu0 0.0
    %2250 = vmatpush.msra.mxu0 0.0
    %2251 = vmatpush.msra.mxu0 0.0
    %2252 = vmatpush.msra.mxu0 %v2233
    %2253 = vmatpush.msra.mxu0 %v2232
    %2254 = vmatmul.f32.gmra.mxu0 %v2236
    %v2255 = vpop.f32.mrf.mxu0
    %v2256 = vadd.f32 %v2234, %v2255
    %2257 = vdwg.mxu0
    %v2258 = vxor.u32 %v2256, 2147483648
    %v2259 = vmul.f32 %v2258, 1.442695
    %v2260 = vpow.pop %v2259
    %v2261 = vadd.f32 %v2260, 1.0
    %v2262 = vrcp.pop %v2261
    %v2263 = vmul.f32 %v2261, %v2262
    %v2264 = vsub.f32 1.0, %v2263
    %v2265 = vmul.f32 %v2262, %v2264
    %v2266 = vadd.f32 %v2262, %v2265
    %vm2267 = vweird.f32 %v2261
    %vm2268 = vweird.f32 %v2262
    %vm2269 = vmor %vm2267, %vm2268
    %v2270 = vsel %vm2269, %v2262, %v2266
    %v2271 = vand.u32 2147483647, %v2261
    %vm2272 = vcmp.eq.f32.partialorder %v2271, 8.507059e+37
    %v2273 = vand.u32 %v2261, 2147483648
    %v2274 = vor.u32 1.1754944e-38, %v2273
    %v2275 = vsel %vm2272, %v2274, %v2270
    %v2276 = vmul.f32 1.0, %v2275
    %vm2277 = vcmask 0
    %2278 = vst.msk [vmem:[#allocation3] sm:$0x1] %vm2277, %v2276
    // Predicated region
    $region130: #{tpu_custom_call.1} parent=1 // pred_check
      _
    $region131: #{tpu_custom_call.1} parent=1 // pred_check_branch
      %2280 = sbr.rel (0) target = $region133
    $region132: #{tpu_custom_call.1} parent=1 // pred_region
      %2282 = vsyncadd [#allocation4], 0
      %s2284 = sshll.u32 [#allocation3], 4
      %s2285 = int_to_ptr.vmem [resolvable:$true] %s2284
      %s2286 = sshll.u32 %s65, 4
      %s2287 = int_to_ptr.hbm [resolvable:$true] %s2286
      %2289 = dma.vmem_to_hbm [thread:$0]  %s2285, 16, %s2287, [#allocation4]
    $region133: #{tpu_custom_call.1} parent=1 // pred_fallthru
      _
    // Predicated region
    $region134: #{tpu_custom_call.1} parent=1 // pred_check
      _
    $region135: #{tpu_custom_call.1} parent=1 // pred_check_branch
      %2291 = sbr.rel (0) target = $region137
    $region136: #{tpu_custom_call.1} parent=1 // pred_region
      %2293 = dma.done [#allocation4], 16
    $region137: #{tpu_custom_call.1} parent=1 // pred_fallthru
      _
    %2294 = vsyncpa [#allocation4], 1

</llo_original>
